<compile_context>
chip_gen: v7x
topology: tpu7x:2x2x1
jax: 0.10.0
libtpu: 0.0.40
codegen_flags: <defaults>
</compile_context>

<pallas_src>
import functools

import jax
import jax.numpy as jnp
from jax.experimental import pallas as pl
from jax.experimental.pallas import tpu as pltpu

# Small, module-consistent shapes (emb_size divisible by num_heads).
BATCH = 2
SEQ = 8
EMB = 32
HEADS = 4
HEAD_DIM = EMB // HEADS
LN_EPS = 1e-5
NEG_BIG = -1e30  # large-negative additive mask (safer than -inf)


def msa_kernel(x_ref, wqkv_ref, bqkv_ref, wo_ref, bo_ref, mask_ref, o_ref, *,
               heads, head_dim):
    """Whole batch in a single invocation.

    x_ref:   (B*S, E)    flattened input rows
    wqkv:    (E, 3E)     [gamma-folded, scale-folded  Wq | Wk | Wv] (pre-transposed)
    bqkv:    (1, 3E)     beta@Wqkv + [bq*scale | bk | bv]
    wo:      (E, E)      out_proj weight (transposed), bo: (1, E)
    mask:    (B*S, B*S)  additive block-diagonal bias (0 same-batch, -1e30 cross)
    o_ref:   (B*S, E)    output rows
    """
    emb = heads * head_dim
    bs = x_ref.shape[0]            # static: B*S

    x = x_ref[...].astype(jnp.float32)                       # (B*S, E)

    # ---- LayerNorm statistics (affine folded into wqkv/bqkv offline) ----
    mean = jnp.mean(x, axis=-1, keepdims=True)
    xc = x - mean
    var = jnp.mean(xc * xc, axis=-1, keepdims=True)
    xhat = xc * jax.lax.rsqrt(var + LN_EPS)                   # (B*S, E)

    # ---- Fused QKV projection: one MXU matmul, 96-lane-wide output ----
    qkv = (jnp.dot(xhat, wqkv_ref[...], preferred_element_type=jnp.float32)
           + bqkv_ref[...])                                   # (B*S, 3E)

    mask_bias = mask_ref[...]                                 # (B*S, B*S)

    # ---- Per-head attention; out-projection fused into the head loop ----
    acc = jnp.zeros((bs, emb), jnp.float32)
    for h in range(heads):                                    # static unrolled
        q_h = qkv[:, h * head_dim:(h + 1) * head_dim]         # already scaled
        k_h = qkv[:, emb + h * head_dim:emb + (h + 1) * head_dim]
        v_h = qkv[:, 2 * emb + h * head_dim:2 * emb + (h + 1) * head_dim]
        # scores = q @ k^T via dot_general (contract over head_dim)
        s = jax.lax.dot_general(q_h, k_h, (((1,), (1,)), ((), ())),
                                preferred_element_type=jnp.float32)  # (B*S,B*S)
        s = s + mask_bias                                     # block-diag mask
        s = s - jnp.max(s, axis=-1, keepdims=True)
        p = jnp.exp(s)
        denom = jnp.sum(p, axis=-1, keepdims=True)
        # TODO(synk): attention-weight dropout omitted (inference semantics).
        # Deferred normalization: scale the small (B*S, head_dim) context,
        # not the (B*S, B*S) probability matrix.  Exact reciprocal for parity.
        ctx_h = (jnp.dot(p, v_h, preferred_element_type=jnp.float32)
                 * pl.reciprocal(denom, approx=False))        # (B*S, head_dim)
        wo_h = wo_ref[h * head_dim:(h + 1) * head_dim, :]     # (head_dim, E)
        acc = acc + jnp.dot(ctx_h, wo_h, preferred_element_type=jnp.float32)

    o_ref[...] = (acc + bo_ref[...]).astype(o_ref.dtype)


@jax.jit
def msa_block(x, wqkv, bqkv, wo, bo, mask_bias):
    B, S, E = x.shape
    x2 = x.reshape(B * S, E)                 # free reshape outside the kernel
    vmem = pl.BlockSpec(memory_space=pltpu.MemorySpace.VMEM)
    out = pl.pallas_call(
        functools.partial(msa_kernel, heads=HEADS, head_dim=E // HEADS),
        out_shape=jax.ShapeDtypeStruct((B * S, E), x.dtype),
        in_specs=[vmem] * 6,
        out_specs=vmem,
    )(x2, wqkv, bqkv, wo, bo, mask_bias)
    return out.reshape(B, S, E)


def reference(x, gamma, beta, in_proj_w, in_proj_b, out_proj_w, out_proj_b):
    """Pure-JAX reference mirroring PyTorch eval-mode semantics."""
    mean = jnp.mean(x, axis=-1, keepdims=True)
    var = jnp.mean((x - mean) ** 2, axis=-1, keepdims=True)
    xn = (x - mean) / jnp.sqrt(var + LN_EPS) * gamma + beta
    q = xn @ in_proj_w[:EMB].T + in_proj_b[:EMB]
    k = xn @ in_proj_w[EMB:2 * EMB].T + in_proj_b[EMB:2 * EMB]
    v = xn @ in_proj_w[2 * EMB:].T + in_proj_b[2 * EMB:]
    B, S, E = x.shape

    def split(t):  # (B,S,E) -> (B,H,S,Dh)
        return t.reshape(B, S, HEADS, HEAD_DIM).transpose(0, 2, 1, 3)

    qh, kh, vh = split(q), split(k), split(v)
    s = jnp.einsum("bhqd,bhkd->bhqk", qh, kh) / jnp.sqrt(HEAD_DIM)
    p = jax.nn.softmax(s, axis=-1)
    ctx = jnp.einsum("bhqk,bhkd->bhqd", p, vh)
    ctx = ctx.transpose(0, 2, 1, 3).reshape(B, S, E)
    return ctx @ out_proj_w.T + out_proj_b


if __name__ == "__main__":
    key = jax.random.PRNGKey(0)
    keys = jax.random.split(key, 8)

    x = jax.random.normal(keys[0], (BATCH, SEQ, EMB), dtype=jnp.float32)

    # nn.LayerNorm(emb_size): weight=1, bias=0 by default; perturb deterministically.
    gamma = 1.0 + 0.01 * jax.random.normal(keys[1], (EMB,), dtype=jnp.float32)
    beta = 0.01 * jax.random.normal(keys[2], (EMB,), dtype=jnp.float32)

    # nn.MultiheadAttention params: in_proj_weight (3E, E), in_proj_bias (3E,),
    # out_proj.weight (E, E), out_proj.bias (E,).
    wscale = 1.0 / (EMB ** 0.5)
    in_proj_w = wscale * jax.random.normal(keys[3], (3 * EMB, EMB), dtype=jnp.float32)
    in_proj_b = 0.01 * jax.random.normal(keys[4], (3 * EMB,), dtype=jnp.float32)
    out_proj_w = wscale * jax.random.normal(keys[5], (EMB, EMB), dtype=jnp.float32)
    out_proj_b = 0.01 * jax.random.normal(keys[6], (EMB,), dtype=jnp.float32)

    # ---- One-time kernel-side weight prep (all constants, done offline) ----
    #  - PyTorch computes x @ W.T + b, so pre-transpose.
    #  - Fold the 1/sqrt(head_dim) attention scale into Wq / bq.
    #  - Fuse Q|K|V into a single (E, 3E) weight and (1, 3E) bias.
    #  - Fold the LayerNorm affine (gamma, beta) into the fused QKV weight/bias:
    #       (xhat*gamma + beta) @ W + b  ==  xhat @ (diag(gamma)·W) + (beta·W + b)
    attn_scale = 1.0 / (HEAD_DIM ** 0.5)
    wq = in_proj_w[:EMB].T * attn_scale
    wk = in_proj_w[EMB:2 * EMB].T
    wv = in_proj_w[2 * EMB:].T
    bq = in_proj_b[:EMB] * attn_scale
    bk = in_proj_b[EMB:2 * EMB]
    bv = in_proj_b[2 * EMB:]
    wqkv = jnp.concatenate([wq, wk, wv], axis=1)              # (E, 3E)
    bqkv = jnp.concatenate([bq, bk, bv])                      # (3E,)
    wqkv_f = gamma[:, None] * wqkv                            # gamma folded
    bqkv_f = (beta @ wqkv + bqkv).reshape(1, 3 * EMB)         # beta folded
    wo = out_proj_w.T
    bo = out_proj_b.reshape(1, EMB)

    # Precomputed block-diagonal additive mask (input-invariant): 0 within the
    # same batch element, -1e30 across batch elements.
    row_batch = jnp.arange(BATCH * SEQ, dtype=jnp.int32) // SEQ
    mask_bias = jnp.where(row_batch[:, None] == row_batch[None, :],
                          0.0, NEG_BIG).astype(jnp.float32)   # (B*S, B*S)

    out = msa_block(x, wqkv_f, bqkv_f, wo, bo, mask_bias)
    out = jax.block_until_ready(out)

    ref = reference(x, gamma, beta, in_proj_w, in_proj_b, out_proj_w, out_proj_b)
    assert out.shape == (BATCH, SEQ, EMB)
    err = jnp.max(jnp.abs(out - ref))
    # f32 matmuls + exact reciprocal -> tight tolerance.
    assert jnp.allclose(out, ref, atol=1e-4, rtol=1e-4), f"max abs err = {err}"

    print("KERNEL_OK")
</pallas_src>

<mosaic_0001>
module attributes {stable_mosaic.version = 11 : i64} {
  func.func @msa_kernel(%arg0: memref<16x32xf32, #tpu.memory_space<vmem>>, %arg1: memref<32x96xf32, #tpu.memory_space<vmem>>, %arg2: memref<1x96xf32, #tpu.memory_space<vmem>>, %arg3: memref<32x32xf32, #tpu.memory_space<vmem>>, %arg4: memref<1x32xf32, #tpu.memory_space<vmem>>, %arg5: memref<16x16xf32, #tpu.memory_space<vmem>>, %arg6: memref<16x32xf32, #tpu.memory_space<vmem>>) attributes {dimension_semantics = [], scalar_prefetch = 0 : i64, scratch_operands = 0 : i64, tpu.core_type = #tpu.core_type<tc>} {
    %c0 = arith.constant 0 : index
    %c0_0 = arith.constant 0 : index
    %0 = vector.load %arg0[%c0, %c0_0] : memref<16x32xf32, #tpu.memory_space<vmem>>, vector<16x32xf32>
    %cst = arith.constant dense<0.000000e+00> : vector<16xf32>
    %1 = vector.multi_reduction <add>, %0, %cst [1] : vector<16x32xf32> to vector<16xf32>
    %2 = vector.shape_cast %1 : vector<16xf32> to vector<16x1xf32>
    %cst_1 = arith.constant 3.200000e+01 : f32
    %3 = vector.broadcast %cst_1 : f32 to vector<16x1xf32>
    %4 = arith.divf %2, %3 : vector<16x1xf32>
    %5 = vector.broadcast %4 : vector<16x1xf32> to vector<16x32xf32>
    %6 = arith.subf %0, %5 : vector<16x32xf32>
    %7 = arith.mulf %6, %6 : vector<16x32xf32>
    %cst_2 = arith.constant dense<0.000000e+00> : vector<16xf32>
    %8 = vector.multi_reduction <add>, %7, %cst_2 [1] : vector<16x32xf32> to vector<16xf32>
    %9 = vector.shape_cast %8 : vector<16xf32> to vector<16x1xf32>
    %cst_3 = arith.constant 3.200000e+01 : f32
    %10 = vector.broadcast %cst_3 : f32 to vector<16x1xf32>
    %11 = arith.divf %9, %10 : vector<16x1xf32>
    %cst_4 = arith.constant 9.99999974E-6 : f32
    %12 = vector.broadcast %cst_4 : f32 to vector<16x1xf32>
    %13 = arith.addf %11, %12 : vector<16x1xf32>
    %14 = math.rsqrt %13 : vector<16x1xf32>
    %15 = vector.broadcast %14 : vector<16x1xf32> to vector<16x32xf32>
    %16 = arith.mulf %6, %15 : vector<16x32xf32>
    %c0_5 = arith.constant 0 : index
    %c0_6 = arith.constant 0 : index
    %17 = vector.load %arg1[%c0_5, %c0_6] : memref<32x96xf32, #tpu.memory_space<vmem>>, vector<32x96xf32>
    %cst_7 = arith.constant dense<0.000000e+00> : vector<16x96xf32>
    %18 = tpu.matmul %16, %17, %cst_7 {dimension_numbers = #tpu.dot_dimension_numbers<[1], [0], [0], [1], [0, 0, 1, 1], [], []>} : vector<16x32xf32>, vector<32x96xf32>, vector<16x96xf32> -> vector<16x96xf32>
    %c0_8 = arith.constant 0 : index
    %c0_9 = arith.constant 0 : index
    %19 = vector.load %arg2[%c0_8, %c0_9] : memref<1x96xf32, #tpu.memory_space<vmem>>, vector<1x96xf32>
    %20 = vector.broadcast %19 : vector<1x96xf32> to vector<16x96xf32>
    %21 = arith.addf %18, %20 : vector<16x96xf32>
    %c0_10 = arith.constant 0 : index
    %c0_11 = arith.constant 0 : index
    %22 = vector.load %arg5[%c0_10, %c0_11] : memref<16x16xf32, #tpu.memory_space<vmem>>, vector<16x16xf32>
    %cst_12 = arith.constant 0.000000e+00 : f32
    %23 = vector.broadcast %cst_12 : f32 to vector<16x32xf32>
    %24 = vector.extract_strided_slice %21 {offsets = [0, 0], sizes = [16, 8], strides = [1, 1]} : vector<16x96xf32> to vector<16x8xf32>
    %25 = vector.extract_strided_slice %21 {offsets = [0, 32], sizes = [16, 8], strides = [1, 1]} : vector<16x96xf32> to vector<16x8xf32>
    %26 = vector.extract_strided_slice %21 {offsets = [0, 64], sizes = [16, 8], strides = [1, 1]} : vector<16x96xf32> to vector<16x8xf32>
    %cst_13 = arith.constant dense<0.000000e+00> : vector<16x16xf32>
    %27 = tpu.matmul %24, %25, %cst_13 {dimension_numbers = #tpu.dot_dimension_numbers<[1], [1], [0], [0], [0, 0, 1, 0], [], []>} : vector<16x8xf32>, vector<16x8xf32>, vector<16x16xf32> -> vector<16x16xf32>
    %28 = arith.addf %27, %22 : vector<16x16xf32>
    %cst_14 = arith.constant dense<0xFF800000> : vector<16xf32>
    %29 = vector.multi_reduction <maximumf>, %28, %cst_14 [1] : vector<16x16xf32> to vector<16xf32>
    %30 = vector.shape_cast %29 : vector<16xf32> to vector<16x1xf32>
    %31 = vector.broadcast %30 : vector<16x1xf32> to vector<16x16xf32>
    %32 = arith.subf %28, %31 : vector<16x16xf32>
    %33 = math.exp %32 : vector<16x16xf32>
    %cst_15 = arith.constant dense<0.000000e+00> : vector<16xf32>
    %34 = vector.multi_reduction <add>, %33, %cst_15 [1] : vector<16x16xf32> to vector<16xf32>
    %35 = vector.shape_cast %34 : vector<16xf32> to vector<16x1xf32>
    %cst_16 = arith.constant dense<0.000000e+00> : vector<16x8xf32>
    %36 = tpu.matmul %33, %26, %cst_16 {dimension_numbers = #tpu.dot_dimension_numbers<[1], [0], [0], [1], [0, 0, 1, 1], [], []>} : vector<16x16xf32>, vector<16x8xf32>, vector<16x8xf32> -> vector<16x8xf32>
    %37 = tpu.reciprocal %35 : vector<16x1xf32> -> vector<16x1xf32>
    %38 = vector.broadcast %37 : vector<16x1xf32> to vector<16x8xf32>
    %39 = arith.mulf %36, %38 : vector<16x8xf32>
    %c0_17 = arith.constant 0 : index
    %c0_18 = arith.constant 0 : index
    %40 = vector.load %arg3[%c0_17, %c0_18] : memref<32x32xf32, #tpu.memory_space<vmem>>, vector<8x32xf32>
    %cst_19 = arith.constant dense<0.000000e+00> : vector<16x32xf32>
    %41 = tpu.matmul %39, %40, %cst_19 {dimension_numbers = #tpu.dot_dimension_numbers<[1], [0], [0], [1], [0, 0, 1, 1], [], []>} : vector<16x8xf32>, vector<8x32xf32>, vector<16x32xf32> -> vector<16x32xf32>
    %42 = arith.addf %23, %41 : vector<16x32xf32>
    %43 = vector.extract_strided_slice %21 {offsets = [0, 8], sizes = [16, 8], strides = [1, 1]} : vector<16x96xf32> to vector<16x8xf32>
    %44 = vector.extract_strided_slice %21 {offsets = [0, 40], sizes = [16, 8], strides = [1, 1]} : vector<16x96xf32> to vector<16x8xf32>
    %45 = vector.extract_strided_slice %21 {offsets = [0, 72], sizes = [16, 8], strides = [1, 1]} : vector<16x96xf32> to vector<16x8xf32>
    %cst_20 = arith.constant dense<0.000000e+00> : vector<16x16xf32>
    %46 = tpu.matmul %43, %44, %cst_20 {dimension_numbers = #tpu.dot_dimension_numbers<[1], [1], [0], [0], [0, 0, 1, 0], [], []>} : vector<16x8xf32>, vector<16x8xf32>, vector<16x16xf32> -> vector<16x16xf32>
    %47 = arith.addf %46, %22 : vector<16x16xf32>
    %cst_21 = arith.constant dense<0xFF800000> : vector<16xf32>
    %48 = vector.multi_reduction <maximumf>, %47, %cst_21 [1] : vector<16x16xf32> to vector<16xf32>
    %49 = vector.shape_cast %48 : vector<16xf32> to vector<16x1xf32>
    %50 = vector.broadcast %49 : vector<16x1xf32> to vector<16x16xf32>
    %51 = arith.subf %47, %50 : vector<16x16xf32>
    %52 = math.exp %51 : vector<16x16xf32>
    %cst_22 = arith.constant dense<0.000000e+00> : vector<16xf32>
    %53 = vector.multi_reduction <add>, %52, %cst_22 [1] : vector<16x16xf32> to vector<16xf32>
    %54 = vector.shape_cast %53 : vector<16xf32> to vector<16x1xf32>
    %cst_23 = arith.constant dense<0.000000e+00> : vector<16x8xf32>
    %55 = tpu.matmul %52, %45, %cst_23 {dimension_numbers = #tpu.dot_dimension_numbers<[1], [0], [0], [1], [0, 0, 1, 1], [], []>} : vector<16x16xf32>, vector<16x8xf32>, vector<16x8xf32> -> vector<16x8xf32>
    %56 = tpu.reciprocal %54 : vector<16x1xf32> -> vector<16x1xf32>
    %57 = vector.broadcast %56 : vector<16x1xf32> to vector<16x8xf32>
    %58 = arith.mulf %55, %57 : vector<16x8xf32>
    %c8 = arith.constant 8 : index
    %c0_24 = arith.constant 0 : index
    %59 = vector.load %arg3[%c8, %c0_24] : memref<32x32xf32, #tpu.memory_space<vmem>>, vector<8x32xf32>
    %cst_25 = arith.constant dense<0.000000e+00> : vector<16x32xf32>
    %60 = tpu.matmul %58, %59, %cst_25 {dimension_numbers = #tpu.dot_dimension_numbers<[1], [0], [0], [1], [0, 0, 1, 1], [], []>} : vector<16x8xf32>, vector<8x32xf32>, vector<16x32xf32> -> vector<16x32xf32>
    %61 = arith.addf %42, %60 : vector<16x32xf32>
    %62 = vector.extract_strided_slice %21 {offsets = [0, 16], sizes = [16, 8], strides = [1, 1]} : vector<16x96xf32> to vector<16x8xf32>
    %63 = vector.extract_strided_slice %21 {offsets = [0, 48], sizes = [16, 8], strides = [1, 1]} : vector<16x96xf32> to vector<16x8xf32>
    %64 = vector.extract_strided_slice %21 {offsets = [0, 80], sizes = [16, 8], strides = [1, 1]} : vector<16x96xf32> to vector<16x8xf32>
    %cst_26 = arith.constant dense<0.000000e+00> : vector<16x16xf32>
    %65 = tpu.matmul %62, %63, %cst_26 {dimension_numbers = #tpu.dot_dimension_numbers<[1], [1], [0], [0], [0, 0, 1, 0], [], []>} : vector<16x8xf32>, vector<16x8xf32>, vector<16x16xf32> -> vector<16x16xf32>
    %66 = arith.addf %65, %22 : vector<16x16xf32>
    %cst_27 = arith.constant dense<0xFF800000> : vector<16xf32>
    %67 = vector.multi_reduction <maximumf>, %66, %cst_27 [1] : vector<16x16xf32> to vector<16xf32>
    %68 = vector.shape_cast %67 : vector<16xf32> to vector<16x1xf32>
    %69 = vector.broadcast %68 : vector<16x1xf32> to vector<16x16xf32>
    %70 = arith.subf %66, %69 : vector<16x16xf32>
    %71 = math.exp %70 : vector<16x16xf32>
    %cst_28 = arith.constant dense<0.000000e+00> : vector<16xf32>
    %72 = vector.multi_reduction <add>, %71, %cst_28 [1] : vector<16x16xf32> to vector<16xf32>
    %73 = vector.shape_cast %72 : vector<16xf32> to vector<16x1xf32>
    %cst_29 = arith.constant dense<0.000000e+00> : vector<16x8xf32>
    %74 = tpu.matmul %71, %64, %cst_29 {dimension_numbers = #tpu.dot_dimension_numbers<[1], [0], [0], [1], [0, 0, 1, 1], [], []>} : vector<16x16xf32>, vector<16x8xf32>, vector<16x8xf32> -> vector<16x8xf32>
    %75 = tpu.reciprocal %73 : vector<16x1xf32> -> vector<16x1xf32>
    %76 = vector.broadcast %75 : vector<16x1xf32> to vector<16x8xf32>
    %77 = arith.mulf %74, %76 : vector<16x8xf32>
    %c16 = arith.constant 16 : index
    %c0_30 = arith.constant 0 : index
    %78 = vector.load %arg3[%c16, %c0_30] : memref<32x32xf32, #tpu.memory_space<vmem>>, vector<8x32xf32>
    %cst_31 = arith.constant dense<0.000000e+00> : vector<16x32xf32>
    %79 = tpu.matmul %77, %78, %cst_31 {dimension_numbers = #tpu.dot_dimension_numbers<[1], [0], [0], [1], [0, 0, 1, 1], [], []>} : vector<16x8xf32>, vector<8x32xf32>, vector<16x32xf32> -> vector<16x32xf32>
    %80 = arith.addf %61, %79 : vector<16x32xf32>
    %81 = vector.extract_strided_slice %21 {offsets = [0, 24], sizes = [16, 8], strides = [1, 1]} : vector<16x96xf32> to vector<16x8xf32>
    %82 = vector.extract_strided_slice %21 {offsets = [0, 56], sizes = [16, 8], strides = [1, 1]} : vector<16x96xf32> to vector<16x8xf32>
    %83 = vector.extract_strided_slice %21 {offsets = [0, 88], sizes = [16, 8], strides = [1, 1]} : vector<16x96xf32> to vector<16x8xf32>
    %cst_32 = arith.constant dense<0.000000e+00> : vector<16x16xf32>
    %84 = tpu.matmul %81, %82, %cst_32 {dimension_numbers = #tpu.dot_dimension_numbers<[1], [1], [0], [0], [0, 0, 1, 0], [], []>} : vector<16x8xf32>, vector<16x8xf32>, vector<16x16xf32> -> vector<16x16xf32>
    %85 = arith.addf %84, %22 : vector<16x16xf32>
    %cst_33 = arith.constant dense<0xFF800000> : vector<16xf32>
    %86 = vector.multi_reduction <maximumf>, %85, %cst_33 [1] : vector<16x16xf32> to vector<16xf32>
    %87 = vector.shape_cast %86 : vector<16xf32> to vector<16x1xf32>
    %88 = vector.broadcast %87 : vector<16x1xf32> to vector<16x16xf32>
    %89 = arith.subf %85, %88 : vector<16x16xf32>
    %90 = math.exp %89 : vector<16x16xf32>
    %cst_34 = arith.constant dense<0.000000e+00> : vector<16xf32>
    %91 = vector.multi_reduction <add>, %90, %cst_34 [1] : vector<16x16xf32> to vector<16xf32>
    %92 = vector.shape_cast %91 : vector<16xf32> to vector<16x1xf32>
    %cst_35 = arith.constant dense<0.000000e+00> : vector<16x8xf32>
    %93 = tpu.matmul %90, %83, %cst_35 {dimension_numbers = #tpu.dot_dimension_numbers<[1], [0], [0], [1], [0, 0, 1, 1], [], []>} : vector<16x16xf32>, vector<16x8xf32>, vector<16x8xf32> -> vector<16x8xf32>
    %94 = tpu.reciprocal %92 : vector<16x1xf32> -> vector<16x1xf32>
    %95 = vector.broadcast %94 : vector<16x1xf32> to vector<16x8xf32>
    %96 = arith.mulf %93, %95 : vector<16x8xf32>
    %c24 = arith.constant 24 : index
    %c0_36 = arith.constant 0 : index
    %97 = vector.load %arg3[%c24, %c0_36] : memref<32x32xf32, #tpu.memory_space<vmem>>, vector<8x32xf32>
    %cst_37 = arith.constant dense<0.000000e+00> : vector<16x32xf32>
    %98 = tpu.matmul %96, %97, %cst_37 {dimension_numbers = #tpu.dot_dimension_numbers<[1], [0], [0], [1], [0, 0, 1, 1], [], []>} : vector<16x8xf32>, vector<8x32xf32>, vector<16x32xf32> -> vector<16x32xf32>
    %99 = arith.addf %80, %98 : vector<16x32xf32>
    %c0_38 = arith.constant 0 : index
    %c0_39 = arith.constant 0 : index
    %100 = vector.load %arg4[%c0_38, %c0_39] : memref<1x32xf32, #tpu.memory_space<vmem>>, vector<1x32xf32>
    %101 = vector.broadcast %100 : vector<1x32xf32> to vector<16x32xf32>
    %102 = arith.addf %99, %101 : vector<16x32xf32>
    %c0_40 = arith.constant 0 : index
    %c0_41 = arith.constant 0 : index
    %103 = vector.load %arg6[%c0_40, %c0_41] : memref<16x32xf32, #tpu.memory_space<vmem>>, vector<16x32xf32>
    tpu.vector_store %arg6[%c0_40, %c0_41], %102 {strides = array<i32>} : memref<16x32xf32, #tpu.memory_space<vmem>>, vector<16x32xf32>,
    return
  }
}

</mosaic_0001>

<llo_original>
// kernel: msa_block.1
$region0: #{msa_block.1}
  #allocation0 [shape = 'u32[]', space=smem, size = 0x4, offset = 0x4, fixed_abs, tag = 'smem constant byte address 0x4 - core index']
  #allocation1 [shape = 'u32[144,128]{1,0:T(1,128)}', space=vmem, size = 0x12000, scoped, tag = 'internal scratch']
  %s0 = inlined_call_operand.hbm [shape: f32[16,32], index: 0, kind: input, shape index: {}]
  %s1 = inlined_call_operand.hbm [shape: f32[32,96], index: 1, kind: input, shape index: {}]
  %s2 = inlined_call_operand.vmem [shape: f32[1,96], index: 2, kind: input, shape index: {}]
  %s3 = inlined_call_operand.hbm [shape: f32[32,32], index: 3, kind: input, shape index: {}]
  %s4 = inlined_call_operand.vmem [shape: f32[1,32], index: 4, kind: input, shape index: {}]
  %s5 = inlined_call_operand.vmem [shape: f32[16,16], index: 5, kind: input, shape index: {}]
  %s6 = inlined_call_operand.hbm [shape: f32[16,32], index: 6, kind: output, shape index: {}]
  %s7 = sld [smem:[#allocation0]]
  $region46: #{msa_block.1} parent=0
    _
  %s9 = ssub.s32 1, %s7
  %s10 = scalar_select 0, %s9, %s7
  $region1: #{msa_block.1} parent=0
    #allocation2 [shape = 'u8[8192]{0}', space=vmem, size = 0x2000, scoped, tag = 'input window, operand 0, single buffered']
    #allocation3 [shape = 's32[1]{0}', space=sflag, size = 0x4, scoped, tag = 'scoped memory for msa_block.1']
    #allocation4 [shape = 's32[1]{0}', space=sflag, size = 0x4, scoped, tag = 'scoped memory for msa_block.1']
    #allocation5 [shape = 'u8[16384]{0}', space=vmem, size = 0x4000, scoped, tag = 'input window, operand 1, single buffered']
    #allocation6 [shape = 's32[1]{0}', space=sflag, size = 0x4, scoped, tag = 'scoped memory for msa_block.1']
    #allocation7 [shape = 'u8[16384]{0}', space=vmem, size = 0x4000, scoped, tag = 'input window, operand 3, single buffered']
    #allocation8 [shape = 'u8[8192]{0}', space=vmem, size = 0x2000, scoped, tag = 'output window, operand 0, single buffered']
    %11 = vsyncpa [#allocation3], 0
    %12 = vsyncpa [#allocation6], 0
    %13 = vsyncpa [#allocation4], 0
    // Predicated region
    $region2: #{msa_block.1} parent=1 // pred_check
      _
    $region3: #{msa_block.1} parent=1 // pred_check_branch
      %15 = sbr.rel (0) target = $region5
    $region4: #{msa_block.1} parent=1 // pred_region
      %s17 = ssub.s32 256, 256
      %18 = vsyncadd [#allocation3], %s17
      %s19 = sshll.u32 [#allocation2], 4
      %s20 = int_to_ptr.vmem [resolvable:$true] %s19
      %25 = dma.hbm_to_vmem [thread:$0]  %s0, 256, %s20, [#allocation3], 128, 128, 8
    $region5: #{msa_block.1} parent=1 // pred_fallthru
      _
    // Predicated region
    $region6: #{msa_block.1} parent=1 // pred_check
      _
    $region7: #{msa_block.1} parent=1 // pred_check_branch
      %27 = sbr.rel (0) target = $region9
    $region8: #{msa_block.1} parent=1 // pred_region
      %s29 = ssub.s32 512, 512
      %30 = vsyncadd [#allocation6], %s29
      %s31 = sshll.u32 [#allocation5], 4
      %s32 = int_to_ptr.vmem [resolvable:$true] %s31
      %37 = dma.hbm_to_vmem [thread:$0]  %s1, 512, %s32, [#allocation6], 128, 128, 8
    $region9: #{msa_block.1} parent=1 // pred_fallthru
      _
    // Predicated region
    $region10: #{msa_block.1} parent=1 // pred_check
      _
    $region11: #{msa_block.1} parent=1 // pred_check_branch
      %39 = sbr.rel (0) target = $region13
    $region12: #{msa_block.1} parent=1 // pred_region
      _
    $region13: #{msa_block.1} parent=1 // pred_fallthru
      _
    // Predicated region
    $region14: #{msa_block.1} parent=1 // pred_check
      _
    $region15: #{msa_block.1} parent=1 // pred_check_branch
      %41 = sbr.rel (0) target = $region17
    $region16: #{msa_block.1} parent=1 // pred_region
      %s43 = ssub.s32 512, 512
      %44 = vsyncadd [#allocation6], %s43
      %s45 = sshll.u32 [#allocation7], 4
      %s46 = int_to_ptr.vmem [resolvable:$true] %s45
      %51 = dma.hbm_to_vmem [thread:$0]  %s3, 512, %s46, [#allocation6], 128, 128, 8
    $region17: #{msa_block.1} parent=1 // pred_fallthru
      _
    // Predicated region
    $region18: #{msa_block.1} parent=1 // pred_check
      _
    $region19: #{msa_block.1} parent=1 // pred_check_branch
      %53 = sbr.rel (0) target = $region21
    $region20: #{msa_block.1} parent=1 // pred_region
      _
    $region21: #{msa_block.1} parent=1 // pred_fallthru
      _
    // Predicated region
    $region22: #{msa_block.1} parent=1 // pred_check
      _
    $region23: #{msa_block.1} parent=1 // pred_check_branch
      %55 = sbr.rel (0) target = $region25
    $region24: #{msa_block.1} parent=1 // pred_region
      _
    $region25: #{msa_block.1} parent=1 // pred_fallthru
      _
    // Predicated region
    $region26: #{msa_block.1} parent=1 // pred_check
      _
    $region27: #{msa_block.1} parent=1 // pred_check_branch
      %57 = sbr.rel (0) target = $region29
    $region28: #{msa_block.1} parent=1 // pred_region
      %58 = dma.done [#allocation3], 256
    $region29: #{msa_block.1} parent=1 // pred_fallthru
      _
    // Predicated region
    $region30: #{msa_block.1} parent=1 // pred_check
      _
    $region31: #{msa_block.1} parent=1 // pred_check_branch
      %60 = sbr.rel (0) target = $region33
    $region32: #{msa_block.1} parent=1 // pred_region
      %61 = dma.done [#allocation6], 512
    $region33: #{msa_block.1} parent=1 // pred_fallthru
      _
    // Predicated region
    $region34: #{msa_block.1} parent=1 // pred_check
      _
    $region35: #{msa_block.1} parent=1 // pred_check_branch
      %63 = sbr.rel (0) target = $region37
    $region36: #{msa_block.1} parent=1 // pred_region
      %64 = dma.done [#allocation6], 512
    $region37: #{msa_block.1} parent=1 // pred_fallthru
      _
    %v65 = vld [vmem:[#allocation2] sm:$0xff]
    %v66 = vld [vmem:[#allocation2 + $0x8] sm:$0xff]
    %vm67 = vcmask 261120
    %v68 = vsel %vm67, %v65, 0.0
    %69 = vadd.xlane.f32.xlu0 %v68
    %v70 = vpop.xlane.xlu0 %69
    %v71 = vsel %vm67, %v66, 0.0
    %72 = vadd.xlane.f32.xlu0 %v71
    %v73 = vpop.xlane.xlu0 %72
    %v74 = vrcp.pop 32.0
    %v75 = vmul.f32 %v70, %v74
    %v76 = vmul.f32 %v73, %v74
    %v77 = vsub.f32 %v65, %v75
    %v78 = vsub.f32 %v66, %v76
    %v79 = vmul.f32 %v77, %v77
    %v80 = vmul.f32 %v78, %v78
    %v81 = vsel %vm67, %v79, 0.0
    %82 = vadd.xlane.f32.xlu0 %v81
    %v83 = vpop.xlane.xlu0 %82
    %v84 = vsel %vm67, %v80, 0.0
    %85 = vadd.xlane.f32.xlu0 %v84
    %v86 = vpop.xlane.xlu0 %85
    %v87 = vmul.f32 %v83, %v74
    %v88 = vmul.f32 %v86, %v74
    %v89 = vadd.f32 %v87, 1e-05
    %v90 = vadd.f32 %v88, 1e-05
    %v91 = vrsqrt.pop %v89
    %v92 = vrsqrt.pop %v90
    %v93 = vmul.f32 %v77, %v91
    %v94 = vmul.f32 %v78, %v92
    %v95 = vld [vmem:[#allocation5] sm:$0xff]
    %v96 = vld [vmem:[#allocation5 + $0x8] sm:$0xff]
    %v97 = vld [vmem:[#allocation5 + $0x10] sm:$0xff]
    %v98 = vld [vmem:[#allocation5 + $0x18] sm:$0xff]
    %v99 = vld [vmem:[%s2] sm:$0x1]
    %v101 = vlaneseq
    %v102 = vshrl.u32 %v101, 7
    %v103 = vsub.s32 0, %v102
    %v104 = vrot.slane %v99, %v103
    %v107 = vsel %vm67, %v93, 0
    %v110 = vsel %vm67, %v94, 0
    %112 = vmatprep.subr.mxu0 0.0
    %113 = vmatpush1.msra.mxu0 %v95
    %114 = vmatprep.subr.mxu0 0.0
    %115 = vmatpush1.msra.mxu0 %v96
    %116 = vmatprep.subr.mxu0 0.0
    %117 = vmatpush1.msra.mxu0 %v97
    %118 = vmatprep.subr.mxu0 0.0
    %119 = vmatpush1.msra.mxu0 %v98
    %120 = vmatprep.subr.mxu0 0.0
    %121 = vmatpush1.msra.mxu0 0.0
    %122 = vmatprep.subr.mxu0 0.0
    %123 = vmatpush1.msra.mxu0 0.0
    %124 = vmatprep.subr.mxu0 0.0
    %125 = vmatpush1.msra.mxu0 0.0
    %126 = vmatprep.subr.mxu0 0.0
    %127 = vmatpush1.msra.mxu0 0.0
    %128 = vmatprep.subr.mxu0 0.0
    %129 = vmatpush1.msra.mxu0 0.0
    %130 = vmatprep.subr.mxu0 0.0
    %131 = vmatpush1.msra.mxu0 0.0
    %132 = vmatprep.subr.mxu0 0.0
    %133 = vmatpush1.msra.mxu0 0.0
    %134 = vmatprep.subr.mxu0 0.0
    %135 = vmatpush1.msra.mxu0 0.0
    %136 = vmatprep.subr.mxu0 0.0
    %137 = vmatpush1.msra.mxu0 0.0
    %138 = vmatprep.subr.mxu0 0.0
    %139 = vmatpush1.msra.mxu0 0.0
    %140 = vmatprep.subr.mxu0 0.0
    %141 = vmatpush1.msra.mxu0 0.0
    %142 = vmatprep.subr.mxu0 0.0
    %143 = vmatpush1.msra.mxu0 0.0
    %144 = vmatprep.subr.mxu0 0.0
    %145 = vmatpush1.msra.mxu0 0.0
    %146 = vmatprep.subr.mxu0 0.0
    %147 = vmatpush1.msra.mxu0 0.0
    %148 = vmatprep.subr.mxu0 0.0
    %149 = vmatpush1.msra.mxu0 0.0
    %150 = vmatprep.subr.mxu0 0.0
    %151 = vmatpush1.msra.mxu0 0.0
    %152 = vmatprep.subr.mxu0 0.0
    %153 = vmatpush1.msra.mxu0 0.0
    %154 = vmatprep.subr.mxu0 0.0
    %155 = vmatpush1.msra.mxu0 0.0
    %156 = vmatprep.subr.mxu0 0.0
    %157 = vmatpush1.msra.mxu0 0.0
    %158 = vmatprep.subr.mxu0 0.0
    %159 = vmatpush1.msra.mxu0 0.0
    %160 = vmatprep.subr.mxu0 0.0
    %161 = vmatpush1.msra.mxu0 0.0
    %162 = vmatprep.subr.mxu0 0.0
    %163 = vmatpush1.msra.mxu0 0.0
    %164 = vmatprep.subr.mxu0 0.0
    %165 = vmatpush1.msra.mxu0 0.0
    %166 = vmatprep.subr.mxu0 0.0
    %167 = vmatpush1.msra.mxu0 0.0
    %168 = vmatprep.subr.mxu0 0.0
    %169 = vmatpush1.msra.mxu0 0.0
    %170 = vmatprep.subr.mxu0 0.0
    %171 = vmatpush1.msra.mxu0 0.0
    %172 = vmatprep.subr.mxu0 0.0
    %173 = vmatpush1.msra.mxu0 0.0
    %174 = vmatprep.subr.mxu0 0.0
    %175 = vmatpush1.msra.mxu0 0.0
    %176 = vmatprep.mubr.f32.mxu0 0.0
    %177 = vmatmul.mubr.f32.gmra.mrb[0].mxu0 %v107
    %v178 = vpop.f32.mrb[0].mxu0
    %v179 = vadd.f32 %v104, %v178
    %v180 = vpop.f32.mrb[0].mxu0
    %181 = vmatprep.mubr.f32.mxu0 0.0
    %182 = vmatmul.mubr.f32.gmra.mrb[0].mxu0 %v110
    %v183 = vpop.f32.mrb[0].mxu0
    %v184 = vadd.f32 %v104, %v183
    %v185 = vpop.f32.mrb[0].mxu0
    %186 = vdwg.mxu0
    %v187 = vld [vmem:[%s5] sm:$0xff]
    %v188 = vld [vmem:[%s5 + $0x8] sm:$0xff]
    %191 = vrot.lane.b32.xlu0 %v179, 96
    %v192 = vpop.permute.xlu0 %191
    %193 = vrot.lane.b32.xlu0 %v184, 96
    %v194 = vpop.permute.xlu0 %193
    %vm195 = vcmask 64512
    %v196 = vsel %vm195, %v179, 0
    %v198 = vsel %vm195, %v184, 0
    %v200 = vsel %vm195, %v192, 0
    %v202 = vsel %vm195, %v194, 0
    %204 = vmatprep.subr.mxu0 0.0
    %205 = vmatpush1.xpose.msra.mxu0 %v200
    %206 = vmatprep.subr.mxu0 0.0
    %207 = vmatpush1.xpose.msra.mxu0 %v202
    %208 = vmatprep.subr.mxu0 0.0
    %209 = vmatpush1.xpose.msra.mxu0 0.0
    %210 = vmatprep.subr.mxu0 0.0
    %211 = vmatpush1.xpose.msra.mxu0 0.0
    %212 = vmatprep.subr.mxu0 0.0
    %213 = vmatpush1.xpose.msra.mxu0 0.0
    %214 = vmatprep.subr.mxu0 0.0
    %215 = vmatpush1.xpose.msra.mxu0 0.0
    %216 = vmatprep.subr.mxu0 0.0
    %217 = vmatpush1.xpose.msra.mxu0 0.0
    %218 = vmatprep.subr.mxu0 0.0
    %219 = vmatpush1.xpose.msra.mxu0 0.0
    %220 = vmatprep.subr.mxu0 0.0
    %221 = vmatpush1.xpose.msra.mxu0 0.0
    %222 = vmatprep.subr.mxu0 0.0
    %223 = vmatpush1.xpose.msra.mxu0 0.0
    %224 = vmatprep.subr.mxu0 0.0
    %225 = vmatpush1.xpose.msra.mxu0 0.0
    %226 = vmatprep.subr.mxu0 0.0
    %227 = vmatpush1.xpose.msra.mxu0 0.0
    %228 = vmatprep.subr.mxu0 0.0
    %229 = vmatpush1.xpose.msra.mxu0 0.0
    %230 = vmatprep.subr.mxu0 0.0
    %231 = vmatpush1.xpose.msra.mxu0 0.0
    %232 = vmatprep.subr.mxu0 0.0
    %233 = vmatpush1.xpose.msra.mxu0 0.0
    %234 = vmatprep.subr.mxu0 0.0
    %235 = vmatpush1.xpose.msra.mxu0 0.0
    %236 = vmatprep.subr.mxu0 0.0
    %237 = vmatpush1.xpose.msra.mxu0 0.0
    %238 = vmatprep.subr.mxu0 0.0
    %239 = vmatpush1.xpose.msra.mxu0 0.0
    %240 = vmatprep.subr.mxu0 0.0
    %241 = vmatpush1.xpose.msra.mxu0 0.0
    %242 = vmatprep.subr.mxu0 0.0
    %243 = vmatpush1.xpose.msra.mxu0 0.0
    %244 = vmatprep.subr.mxu0 0.0
    %245 = vmatpush1.xpose.msra.mxu0 0.0
    %246 = vmatprep.subr.mxu0 0.0
    %247 = vmatpush1.xpose.msra.mxu0 0.0
    %248 = vmatprep.subr.mxu0 0.0
    %249 = vmatpush1.xpose.msra.mxu0 0.0
    %250 = vmatprep.subr.mxu0 0.0
    %251 = vmatpush1.xpose.msra.mxu0 0.0
    %252 = vmatprep.subr.mxu0 0.0
    %253 = vmatpush1.xpose.msra.mxu0 0.0
    %254 = vmatprep.subr.mxu0 0.0
    %255 = vmatpush1.xpose.msra.mxu0 0.0
    %256 = vmatprep.subr.mxu0 0.0
    %257 = vmatpush1.xpose.msra.mxu0 0.0
    %258 = vmatprep.subr.mxu0 0.0
    %259 = vmatpush1.xpose.msra.mxu0 0.0
    %260 = vmatprep.subr.mxu0 0.0
    %261 = vmatpush1.xpose.msra.mxu0 0.0
    %262 = vmatprep.subr.mxu0 0.0
    %263 = vmatpush1.xpose.msra.mxu0 0.0
    %264 = vmatprep.subr.mxu0 0.0
    %265 = vmatpush1.xpose.msra.mxu0 0.0
    %266 = vmatprep.subr.mxu0 0.0
    %267 = vmatpush1.xpose.msra.mxu0 0.0
    %268 = vmatprep.mubr.f32.mxu0 0.0
    %269 = vmatmul.mubr.f32.gmra.mrb[0].mxu0 %v196
    %v270 = vpop.f32.mrb[0].mxu0
    %v271 = vadd.f32 %v187, %v270
    %v272 = vpop.f32.mrb[0].mxu0
    %273 = vmatprep.mubr.f32.mxu0 0.0
    %274 = vmatmul.mubr.f32.gmra.mrb[0].mxu0 %v198
    %v275 = vpop.f32.mrb[0].mxu0
    %v276 = vadd.f32 %v188, %v275
    %v277 = vpop.f32.mrb[0].mxu0
    %278 = vdwg.mxu0
    %vm279 = vcmask 130048
    %v280 = vsel %vm279, %v271, -inf
    %281 = vmax.xlane.f32.xlu0 %v280
    %v282 = vpop.xlane.xlu0 %281
    %v283 = vsel %vm279, %v276, -inf
    %284 = vmax.xlane.f32.xlu0 %v283
    %v285 = vpop.xlane.xlu0 %284
    %v286 = vsub.f32 %v271, %v282
    %v287 = vsub.f32 %v276, %v285
    %v288 = vmul.f32 %v286, 1.442695
    %v289 = vpow.pop %v288
    %v290 = vmul.f32 %v287, 1.442695
    %v291 = vpow.pop %v290
    %v292 = vsel %vm279, %v289, 0.0
    %293 = vadd.xlane.f32.xlu0 %v292
    %v294 = vpop.xlane.xlu0 %293
    %v295 = vsel %vm279, %v291, 0.0
    %296 = vadd.xlane.f32.xlu0 %v295
    %v297 = vpop.xlane.xlu0 %296
    %298 = vrot.lane.b32.xlu0 %v179, 64
    %v299 = vpop.permute.xlu0 %298
    %300 = vrot.lane.b32.xlu0 %v184, 64
    %v301 = vpop.permute.xlu0 %300
    %v305 = vsel %vm279, %v289, 0
    %v308 = vsel %vm279, %v291, 0
    %310 = vmatprep.subr.mxu0 0.0
    %311 = vmatpush1.msra.mxu0 %v299
    %312 = vmatprep.subr.mxu0 0.0
    %313 = vmatpush1.msra.mxu0 %v301
    %314 = vmatprep.subr.mxu0 0.0
    %315 = vmatpush1.msra.mxu0 0.0
    %316 = vmatprep.subr.mxu0 0.0
    %317 = vmatpush1.msra.mxu0 0.0
    %318 = vmatprep.subr.mxu0 0.0
    %319 = vmatpush1.msra.mxu0 0.0
    %320 = vmatprep.subr.mxu0 0.0
    %321 = vmatpush1.msra.mxu0 0.0
    %322 = vmatprep.subr.mxu0 0.0
    %323 = vmatpush1.msra.mxu0 0.0
    %324 = vmatprep.subr.mxu0 0.0
    %325 = vmatpush1.msra.mxu0 0.0
    %326 = vmatprep.subr.mxu0 0.0
    %327 = vmatpush1.msra.mxu0 0.0
    %328 = vmatprep.subr.mxu0 0.0
    %329 = vmatpush1.msra.mxu0 0.0
    %330 = vmatprep.subr.mxu0 0.0
    %331 = vmatpush1.msra.mxu0 0.0
    %332 = vmatprep.subr.mxu0 0.0
    %333 = vmatpush1.msra.mxu0 0.0
    %334 = vmatprep.subr.mxu0 0.0
    %335 = vmatpush1.msra.mxu0 0.0
    %336 = vmatprep.subr.mxu0 0.0
    %337 = vmatpush1.msra.mxu0 0.0
    %338 = vmatprep.subr.mxu0 0.0
    %339 = vmatpush1.msra.mxu0 0.0
    %340 = vmatprep.subr.mxu0 0.0
    %341 = vmatpush1.msra.mxu0 0.0
    %342 = vmatprep.subr.mxu0 0.0
    %343 = vmatpush1.msra.mxu0 0.0
    %344 = vmatprep.subr.mxu0 0.0
    %345 = vmatpush1.msra.mxu0 0.0
    %346 = vmatprep.subr.mxu0 0.0
    %347 = vmatpush1.msra.mxu0 0.0
    %348 = vmatprep.subr.mxu0 0.0
    %349 = vmatpush1.msra.mxu0 0.0
    %350 = vmatprep.subr.mxu0 0.0
    %351 = vmatpush1.msra.mxu0 0.0
    %352 = vmatprep.subr.mxu0 0.0
    %353 = vmatpush1.msra.mxu0 0.0
    %354 = vmatprep.subr.mxu0 0.0
    %355 = vmatpush1.msra.mxu0 0.0
    %356 = vmatprep.subr.mxu0 0.0
    %357 = vmatpush1.msra.mxu0 0.0
    %358 = vmatprep.subr.mxu0 0.0
    %359 = vmatpush1.msra.mxu0 0.0
    %360 = vmatprep.subr.mxu0 0.0
    %361 = vmatpush1.msra.mxu0 0.0
    %362 = vmatprep.subr.mxu0 0.0
    %363 = vmatpush1.msra.mxu0 0.0
    %364 = vmatprep.subr.mxu0 0.0
    %365 = vmatpush1.msra.mxu0 0.0
    %366 = vmatprep.subr.mxu0 0.0
    %367 = vmatpush1.msra.mxu0 0.0
    %368 = vmatprep.subr.mxu0 0.0
    %369 = vmatpush1.msra.mxu0 0.0
    %370 = vmatprep.subr.mxu0 0.0
    %371 = vmatpush1.msra.mxu0 0.0
    %372 = vmatprep.subr.mxu0 0.0
    %373 = vmatpush1.msra.mxu0 0.0
    %374 = vmatprep.mubr.f32.mxu0 0.0
    %375 = vmatmul.mubr.f32.gmra.mrb[0].mxu0 %v305
    %v376 = vpop.f32.mrb[0].mxu0
    %v377 = vadd.f32 0.0, %v376
    %v378 = vpop.f32.mrb[0].mxu0
    %379 = vmatprep.mubr.f32.mxu0 0.0
    %380 = vmatmul.mubr.f32.gmra.mrb[0].mxu0 %v308
    %v381 = vpop.f32.mrb[0].mxu0
    %v382 = vadd.f32 0.0, %v381
    %v383 = vpop.f32.mrb[0].mxu0
    %384 = vdwg.mxu0
    %v385 = vrcp.pop %v294
    %v386 = vrcp.pop %v297
    %v387 = vmul.f32 %v377, %v385
    %v388 = vmul.f32 %v382, %v386
    %v389 = vld [vmem:[#allocation7] sm:$0xff]
    %390 = vrot.lane.b32.xlu0 %v179, 120
    %v391 = vpop.permute.xlu0 %390
    %392 = vrot.lane.b32.xlu0 %v184, 120
    %v393 = vpop.permute.xlu0 %392
    %394 = vrot.lane.b32.xlu0 %v179, 88
    %v395 = vpop.permute.xlu0 %394
    %396 = vrot.lane.b32.xlu0 %v184, 88
    %v397 = vpop.permute.xlu0 %396
    %v398 = vsel %vm195, %v391, 0
    %v400 = vsel %vm195, %v393, 0
    %v402 = vsel %vm195, %v395, 0
    %v404 = vsel %vm195, %v397, 0
    %406 = vmatprep.subr.mxu0 0.0
    %407 = vmatpush1.xpose.msra.mxu0 %v402
    %408 = vmatprep.subr.mxu0 0.0
    %409 = vmatpush1.xpose.msra.mxu0 %v404
    %410 = vmatprep.subr.mxu0 0.0
    %411 = vmatpush1.xpose.msra.mxu0 0.0
    %412 = vmatprep.subr.mxu0 0.0
    %413 = vmatpush1.xpose.msra.mxu0 0.0
    %414 = vmatprep.subr.mxu0 0.0
    %415 = vmatpush1.xpose.msra.mxu0 0.0
    %416 = vmatprep.subr.mxu0 0.0
    %417 = vmatpush1.xpose.msra.mxu0 0.0
    %418 = vmatprep.subr.mxu0 0.0
    %419 = vmatpush1.xpose.msra.mxu0 0.0
    %420 = vmatprep.subr.mxu0 0.0
    %421 = vmatpush1.xpose.msra.mxu0 0.0
    %422 = vmatprep.subr.mxu0 0.0
    %423 = vmatpush1.xpose.msra.mxu0 0.0
    %424 = vmatprep.subr.mxu0 0.0
    %425 = vmatpush1.xpose.msra.mxu0 0.0
    %426 = vmatprep.subr.mxu0 0.0
    %427 = vmatpush1.xpose.msra.mxu0 0.0
    %428 = vmatprep.subr.mxu0 0.0
    %429 = vmatpush1.xpose.msra.mxu0 0.0
    %430 = vmatprep.subr.mxu0 0.0
    %431 = vmatpush1.xpose.msra.mxu0 0.0
    %432 = vmatprep.subr.mxu0 0.0
    %433 = vmatpush1.xpose.msra.mxu0 0.0
    %434 = vmatprep.subr.mxu0 0.0
    %435 = vmatpush1.xpose.msra.mxu0 0.0
    %436 = vmatprep.subr.mxu0 0.0
    %437 = vmatpush1.xpose.msra.mxu0 0.0
    %438 = vmatprep.subr.mxu0 0.0
    %439 = vmatpush1.xpose.msra.mxu0 0.0
    %440 = vmatprep.subr.mxu0 0.0
    %441 = vmatpush1.xpose.msra.mxu0 0.0
    %442 = vmatprep.subr.mxu0 0.0
    %443 = vmatpush1.xpose.msra.mxu0 0.0
    %444 = vmatprep.subr.mxu0 0.0
    %445 = vmatpush1.xpose.msra.mxu0 0.0
    %446 = vmatprep.subr.mxu0 0.0
    %447 = vmatpush1.xpose.msra.mxu0 0.0
    %448 = vmatprep.subr.mxu0 0.0
    %449 = vmatpush1.xpose.msra.mxu0 0.0
    %450 = vmatprep.subr.mxu0 0.0
    %451 = vmatpush1.xpose.msra.mxu0 0.0
    %452 = vmatprep.subr.mxu0 0.0
    %453 = vmatpush1.xpose.msra.mxu0 0.0
    %454 = vmatprep.subr.mxu0 0.0
    %455 = vmatpush1.xpose.msra.mxu0 0.0
    %456 = vmatprep.subr.mxu0 0.0
    %457 = vmatpush1.xpose.msra.mxu0 0.0
    %458 = vmatprep.subr.mxu0 0.0
    %459 = vmatpush1.xpose.msra.mxu0 0.0
    %460 = vmatprep.subr.mxu0 0.0
    %461 = vmatpush1.xpose.msra.mxu0 0.0
    %462 = vmatprep.subr.mxu0 0.0
    %463 = vmatpush1.xpose.msra.mxu0 0.0
    %464 = vmatprep.subr.mxu0 0.0
    %465 = vmatpush1.xpose.msra.mxu0 0.0
    %466 = vmatprep.subr.mxu0 0.0
    %467 = vmatpush1.xpose.msra.mxu0 0.0
    %468 = vmatprep.subr.mxu0 0.0
    %469 = vmatpush1.xpose.msra.mxu0 0.0
    %470 = vmatprep.mubr.f32.mxu0 0.0
    %471 = vmatmul.mubr.f32.gmra.mrb[0].mxu0 %v398
    %v472 = vpop.f32.mrb[0].mxu0
    %v473 = vadd.f32 %v187, %v472
    %v474 = vpop.f32.mrb[0].mxu0
    %475 = vmatprep.mubr.f32.mxu0 0.0
    %476 = vmatmul.mubr.f32.gmra.mrb[0].mxu0 %v400
    %v477 = vpop.f32.mrb[0].mxu0
    %v478 = vadd.f32 %v188, %v477
    %v479 = vpop.f32.mrb[0].mxu0
    %480 = vdwg.mxu0
    %v481 = vsel %vm279, %v473, -inf
    %482 = vmax.xlane.f32.xlu0 %v481
    %v483 = vpop.xlane.xlu0 %482
    %v484 = vsel %vm279, %v478, -inf
    %485 = vmax.xlane.f32.xlu0 %v484
    %v486 = vpop.xlane.xlu0 %485
    %v487 = vsub.f32 %v473, %v483
    %v488 = vsub.f32 %v478, %v486
    %v489 = vmul.f32 %v487, 1.442695
    %v490 = vpow.pop %v489
    %v491 = vmul.f32 %v488, 1.442695
    %v492 = vpow.pop %v491
    %v493 = vsel %vm279, %v490, 0.0
    %494 = vadd.xlane.f32.xlu0 %v493
    %v495 = vpop.xlane.xlu0 %494
    %v496 = vsel %vm279, %v492, 0.0
    %497 = vadd.xlane.f32.xlu0 %v496
    %v498 = vpop.xlane.xlu0 %497
    %499 = vrot.lane.b32.xlu0 %v179, 56
    %v500 = vpop.permute.xlu0 %499
    %501 = vrot.lane.b32.xlu0 %v184, 56
    %v502 = vpop.permute.xlu0 %501
    %v506 = vsel %vm279, %v490, 0
    %v509 = vsel %vm279, %v492, 0
    %511 = vmatprep.subr.mxu0 0.0
    %512 = vmatpush1.msra.mxu0 %v500
    %513 = vmatprep.subr.mxu0 0.0
    %514 = vmatpush1.msra.mxu0 %v502
    %515 = vmatprep.subr.mxu0 0.0
    %516 = vmatpush1.msra.mxu0 0.0
    %517 = vmatprep.subr.mxu0 0.0
    %518 = vmatpush1.msra.mxu0 0.0
    %519 = vmatprep.subr.mxu0 0.0
    %520 = vmatpush1.msra.mxu0 0.0
    %521 = vmatprep.subr.mxu0 0.0
    %522 = vmatpush1.msra.mxu0 0.0
    %523 = vmatprep.subr.mxu0 0.0
    %524 = vmatpush1.msra.mxu0 0.0
    %525 = vmatprep.subr.mxu0 0.0
    %526 = vmatpush1.msra.mxu0 0.0
    %527 = vmatprep.subr.mxu0 0.0
    %528 = vmatpush1.msra.mxu0 0.0
    %529 = vmatprep.subr.mxu0 0.0
    %530 = vmatpush1.msra.mxu0 0.0
    %531 = vmatprep.subr.mxu0 0.0
    %532 = vmatpush1.msra.mxu0 0.0
    %533 = vmatprep.subr.mxu0 0.0
    %534 = vmatpush1.msra.mxu0 0.0
    %535 = vmatprep.subr.mxu0 0.0
    %536 = vmatpush1.msra.mxu0 0.0
    %537 = vmatprep.subr.mxu0 0.0
    %538 = vmatpush1.msra.mxu0 0.0
    %539 = vmatprep.subr.mxu0 0.0
    %540 = vmatpush1.msra.mxu0 0.0
    %541 = vmatprep.subr.mxu0 0.0
    %542 = vmatpush1.msra.mxu0 0.0
    %543 = vmatprep.subr.mxu0 0.0
    %544 = vmatpush1.msra.mxu0 0.0
    %545 = vmatprep.subr.mxu0 0.0
    %546 = vmatpush1.msra.mxu0 0.0
    %547 = vmatprep.subr.mxu0 0.0
    %548 = vmatpush1.msra.mxu0 0.0
    %549 = vmatprep.subr.mxu0 0.0
    %550 = vmatpush1.msra.mxu0 0.0
    %551 = vmatprep.subr.mxu0 0.0
    %552 = vmatpush1.msra.mxu0 0.0
    %553 = vmatprep.subr.mxu0 0.0
    %554 = vmatpush1.msra.mxu0 0.0
    %555 = vmatprep.subr.mxu0 0.0
    %556 = vmatpush1.msra.mxu0 0.0
    %557 = vmatprep.subr.mxu0 0.0
    %558 = vmatpush1.msra.mxu0 0.0
    %559 = vmatprep.subr.mxu0 0.0
    %560 = vmatpush1.msra.mxu0 0.0
    %561 = vmatprep.subr.mxu0 0.0
    %562 = vmatpush1.msra.mxu0 0.0
    %563 = vmatprep.subr.mxu0 0.0
    %564 = vmatpush1.msra.mxu0 0.0
    %565 = vmatprep.subr.mxu0 0.0
    %566 = vmatpush1.msra.mxu0 0.0
    %567 = vmatprep.subr.mxu0 0.0
    %568 = vmatpush1.msra.mxu0 0.0
    %569 = vmatprep.subr.mxu0 0.0
    %570 = vmatpush1.msra.mxu0 0.0
    %571 = vmatprep.subr.mxu0 0.0
    %572 = vmatpush1.msra.mxu0 0.0
    %573 = vmatprep.subr.mxu0 0.0
    %574 = vmatpush1.msra.mxu0 0.0
    %575 = vmatprep.mubr.f32.mxu0 0.0
    %576 = vmatmul.mubr.f32.gmra.mrb[0].mxu0 %v506
    %v577 = vpop.f32.mrb[0].mxu0
    %v578 = vadd.f32 0.0, %v577
    %v579 = vpop.f32.mrb[0].mxu0
    %580 = vmatprep.mubr.f32.mxu0 0.0
    %581 = vmatmul.mubr.f32.gmra.mrb[0].mxu0 %v509
    %v582 = vpop.f32.mrb[0].mxu0
    %v583 = vadd.f32 0.0, %v582
    %v584 = vpop.f32.mrb[0].mxu0
    %585 = vdwg.mxu0
    %v586 = vrcp.pop %v495
    %v587 = vrcp.pop %v498
    %v588 = vmul.f32 %v578, %v586
    %v589 = vmul.f32 %v583, %v587
    %v590 = vld [vmem:[#allocation7 + $0x8] sm:$0xff]
    %v592 = vsel %vm195, %v588, 0
    %v595 = vsel %vm195, %v589, 0
    %597 = vmatprep.subr.mxu0 0.0
    %598 = vmatpush1.msra.mxu0 %v590
    %599 = vmatprep.subr.mxu0 0.0
    %600 = vmatpush1.msra.mxu0 0.0
    %601 = vmatprep.subr.mxu0 0.0
    %602 = vmatpush1.msra.mxu0 0.0
    %603 = vmatprep.subr.mxu0 0.0
    %604 = vmatpush1.msra.mxu0 0.0
    %605 = vmatprep.subr.mxu0 0.0
    %606 = vmatpush1.msra.mxu0 0.0
    %607 = vmatprep.subr.mxu0 0.0
    %608 = vmatpush1.msra.mxu0 0.0
    %609 = vmatprep.subr.mxu0 0.0
    %610 = vmatpush1.msra.mxu0 0.0
    %611 = vmatprep.subr.mxu0 0.0
    %612 = vmatpush1.msra.mxu0 0.0
    %613 = vmatprep.subr.mxu0 0.0
    %614 = vmatpush1.msra.mxu0 0.0
    %615 = vmatprep.subr.mxu0 0.0
    %616 = vmatpush1.msra.mxu0 0.0
    %617 = vmatprep.subr.mxu0 0.0
    %618 = vmatpush1.msra.mxu0 0.0
    %619 = vmatprep.subr.mxu0 0.0
    %620 = vmatpush1.msra.mxu0 0.0
    %621 = vmatprep.subr.mxu0 0.0
    %622 = vmatpush1.msra.mxu0 0.0
    %623 = vmatprep.subr.mxu0 0.0
    %624 = vmatpush1.msra.mxu0 0.0
    %625 = vmatprep.subr.mxu0 0.0
    %626 = vmatpush1.msra.mxu0 0.0
    %627 = vmatprep.subr.mxu0 0.0
    %628 = vmatpush1.msra.mxu0 0.0
    %629 = vmatprep.subr.mxu0 0.0
    %630 = vmatpush1.msra.mxu0 0.0
    %631 = vmatprep.subr.mxu0 0.0
    %632 = vmatpush1.msra.mxu0 0.0
    %633 = vmatprep.subr.mxu0 0.0
    %634 = vmatpush1.msra.mxu0 0.0
    %635 = vmatprep.subr.mxu0 0.0
    %636 = vmatpush1.msra.mxu0 0.0
    %637 = vmatprep.subr.mxu0 0.0
    %638 = vmatpush1.msra.mxu0 0.0
    %639 = vmatprep.subr.mxu0 0.0
    %640 = vmatpush1.msra.mxu0 0.0
    %641 = vmatprep.subr.mxu0 0.0
    %642 = vmatpush1.msra.mxu0 0.0
    %643 = vmatprep.subr.mxu0 0.0
    %644 = vmatpush1.msra.mxu0 0.0
    %645 = vmatprep.subr.mxu0 0.0
    %646 = vmatpush1.msra.mxu0 0.0
    %647 = vmatprep.subr.mxu0 0.0
    %648 = vmatpush1.msra.mxu0 0.0
    %649 = vmatprep.subr.mxu0 0.0
    %650 = vmatpush1.msra.mxu0 0.0
    %651 = vmatprep.subr.mxu0 0.0
    %652 = vmatpush1.msra.mxu0 0.0
    %653 = vmatprep.subr.mxu0 0.0
    %654 = vmatpush1.msra.mxu0 0.0
    %655 = vmatprep.subr.mxu0 0.0
    %656 = vmatpush1.msra.mxu0 0.0
    %657 = vmatprep.subr.mxu0 0.0
    %658 = vmatpush1.msra.mxu0 0.0
    %659 = vmatprep.subr.mxu0 0.0
    %660 = vmatpush1.msra.mxu0 0.0
    %661 = vmatprep.mubr.f32.mxu0 0.0
    %662 = vmatmul.mubr.f32.gmra.mrb[0].mxu0 %v592
    %v663 = vpop.f32.mrb[0].mxu0
    %v664 = vadd.f32 0.0, %v663
    %v665 = vpop.f32.mrb[0].mxu0
    %666 = vmatprep.mubr.f32.mxu0 0.0
    %667 = vmatmul.mubr.f32.gmra.mrb[0].mxu0 %v595
    %v668 = vpop.f32.mrb[0].mxu0
    %v669 = vadd.f32 0.0, %v668
    %v670 = vpop.f32.mrb[0].mxu0
    %671 = vdwg.mxu0
    %v673 = vsel %vm195, %v387, 0
    %v676 = vsel %vm195, %v388, 0
    %678 = vmatprep.subr.mxu0 0.0
    %679 = vmatpush1.msra.mxu0 %v389
    %680 = vmatprep.subr.mxu0 0.0
    %681 = vmatpush1.msra.mxu0 0.0
    %682 = vmatprep.subr.mxu0 0.0
    %683 = vmatpush1.msra.mxu0 0.0
    %684 = vmatprep.subr.mxu0 0.0
    %685 = vmatpush1.msra.mxu0 0.0
    %686 = vmatprep.subr.mxu0 0.0
    %687 = vmatpush1.msra.mxu0 0.0
    %688 = vmatprep.subr.mxu0 0.0
    %689 = vmatpush1.msra.mxu0 0.0
    %690 = vmatprep.subr.mxu0 0.0
    %691 = vmatpush1.msra.mxu0 0.0
    %692 = vmatprep.subr.mxu0 0.0
    %693 = vmatpush1.msra.mxu0 0.0
    %694 = vmatprep.subr.mxu0 0.0
    %695 = vmatpush1.msra.mxu0 0.0
    %696 = vmatprep.subr.mxu0 0.0
    %697 = vmatpush1.msra.mxu0 0.0
    %698 = vmatprep.subr.mxu0 0.0
    %699 = vmatpush1.msra.mxu0 0.0
    %700 = vmatprep.subr.mxu0 0.0
    %701 = vmatpush1.msra.mxu0 0.0
    %702 = vmatprep.subr.mxu0 0.0
    %703 = vmatpush1.msra.mxu0 0.0
    %704 = vmatprep.subr.mxu0 0.0
    %705 = vmatpush1.msra.mxu0 0.0
    %706 = vmatprep.subr.mxu0 0.0
    %707 = vmatpush1.msra.mxu0 0.0
    %708 = vmatprep.subr.mxu0 0.0
    %709 = vmatpush1.msra.mxu0 0.0
    %710 = vmatprep.subr.mxu0 0.0
    %711 = vmatpush1.msra.mxu0 0.0
    %712 = vmatprep.subr.mxu0 0.0
    %713 = vmatpush1.msra.mxu0 0.0
    %714 = vmatprep.subr.mxu0 0.0
    %715 = vmatpush1.msra.mxu0 0.0
    %716 = vmatprep.subr.mxu0 0.0
    %717 = vmatpush1.msra.mxu0 0.0
    %718 = vmatprep.subr.mxu0 0.0
    %719 = vmatpush1.msra.mxu0 0.0
    %720 = vmatprep.subr.mxu0 0.0
    %721 = vmatpush1.msra.mxu0 0.0
    %722 = vmatprep.subr.mxu0 0.0
    %723 = vmatpush1.msra.mxu0 0.0
    %724 = vmatprep.subr.mxu0 0.0
    %725 = vmatpush1.msra.mxu0 0.0
    %726 = vmatprep.subr.mxu0 0.0
    %727 = vmatpush1.msra.mxu0 0.0
    %728 = vmatprep.subr.mxu0 0.0
    %729 = vmatpush1.msra.mxu0 0.0
    %730 = vmatprep.subr.mxu0 0.0
    %731 = vmatpush1.msra.mxu0 0.0
    %732 = vmatprep.subr.mxu0 0.0
    %733 = vmatpush1.msra.mxu0 0.0
    %734 = vmatprep.subr.mxu0 0.0
    %735 = vmatpush1.msra.mxu0 0.0
    %736 = vmatprep.subr.mxu0 0.0
    %737 = vmatpush1.msra.mxu0 0.0
    %738 = vmatprep.subr.mxu0 0.0
    %739 = vmatpush1.msra.mxu0 0.0
    %740 = vmatprep.subr.mxu0 0.0
    %741 = vmatpush1.msra.mxu0 0.0
    %742 = vmatprep.mubr.f32.mxu0 0.0
    %743 = vmatmul.mubr.f32.gmra.mrb[0].mxu0 %v673
    %v744 = vpop.f32.mrb[0].mxu0
    %v745 = vadd.f32 %v664, %v744
    %v746 = vpop.f32.mrb[0].mxu0
    %747 = vmatprep.mubr.f32.mxu0 0.0
    %748 = vmatmul.mubr.f32.gmra.mrb[0].mxu0 %v676
    %v749 = vpop.f32.mrb[0].mxu0
    %v750 = vadd.f32 %v669, %v749
    %v751 = vpop.f32.mrb[0].mxu0
    %752 = vdwg.mxu0
    %753 = vrot.lane.b32.xlu0 %v179, 112
    %v754 = vpop.permute.xlu0 %753
    %755 = vrot.lane.b32.xlu0 %v184, 112
    %v756 = vpop.permute.xlu0 %755
    %757 = vrot.lane.b32.xlu0 %v179, 80
    %v758 = vpop.permute.xlu0 %757
    %759 = vrot.lane.b32.xlu0 %v184, 80
    %v760 = vpop.permute.xlu0 %759
    %v761 = vsel %vm195, %v754, 0
    %v763 = vsel %vm195, %v756, 0
    %v765 = vsel %vm195, %v758, 0
    %v767 = vsel %vm195, %v760, 0
    %769 = vmatprep.subr.mxu0 0.0
    %770 = vmatpush1.xpose.msra.mxu0 %v765
    %771 = vmatprep.subr.mxu0 0.0
    %772 = vmatpush1.xpose.msra.mxu0 %v767
    %773 = vmatprep.subr.mxu0 0.0
    %774 = vmatpush1.xpose.msra.mxu0 0.0
    %775 = vmatprep.subr.mxu0 0.0
    %776 = vmatpush1.xpose.msra.mxu0 0.0
    %777 = vmatprep.subr.mxu0 0.0
    %778 = vmatpush1.xpose.msra.mxu0 0.0
    %779 = vmatprep.subr.mxu0 0.0
    %780 = vmatpush1.xpose.msra.mxu0 0.0
    %781 = vmatprep.subr.mxu0 0.0
    %782 = vmatpush1.xpose.msra.mxu0 0.0
    %783 = vmatprep.subr.mxu0 0.0
    %784 = vmatpush1.xpose.msra.mxu0 0.0
    %785 = vmatprep.subr.mxu0 0.0
    %786 = vmatpush1.xpose.msra.mxu0 0.0
    %787 = vmatprep.subr.mxu0 0.0
    %788 = vmatpush1.xpose.msra.mxu0 0.0
    %789 = vmatprep.subr.mxu0 0.0
    %790 = vmatpush1.xpose.msra.mxu0 0.0
    %791 = vmatprep.subr.mxu0 0.0
    %792 = vmatpush1.xpose.msra.mxu0 0.0
    %793 = vmatprep.subr.mxu0 0.0
    %794 = vmatpush1.xpose.msra.mxu0 0.0
    %795 = vmatprep.subr.mxu0 0.0
    %796 = vmatpush1.xpose.msra.mxu0 0.0
    %797 = vmatprep.subr.mxu0 0.0
    %798 = vmatpush1.xpose.msra.mxu0 0.0
    %799 = vmatprep.subr.mxu0 0.0
    %800 = vmatpush1.xpose.msra.mxu0 0.0
    %801 = vmatprep.subr.mxu0 0.0
    %802 = vmatpush1.xpose.msra.mxu0 0.0
    %803 = vmatprep.subr.mxu0 0.0
    %804 = vmatpush1.xpose.msra.mxu0 0.0
    %805 = vmatprep.subr.mxu0 0.0
    %806 = vmatpush1.xpose.msra.mxu0 0.0
    %807 = vmatprep.subr.mxu0 0.0
    %808 = vmatpush1.xpose.msra.mxu0 0.0
    %809 = vmatprep.subr.mxu0 0.0
    %810 = vmatpush1.xpose.msra.mxu0 0.0
    %811 = vmatprep.subr.mxu0 0.0
    %812 = vmatpush1.xpose.msra.mxu0 0.0
    %813 = vmatprep.subr.mxu0 0.0
    %814 = vmatpush1.xpose.msra.mxu0 0.0
    %815 = vmatprep.subr.mxu0 0.0
    %816 = vmatpush1.xpose.msra.mxu0 0.0
    %817 = vmatprep.subr.mxu0 0.0
    %818 = vmatpush1.xpose.msra.mxu0 0.0
    %819 = vmatprep.subr.mxu0 0.0
    %820 = vmatpush1.xpose.msra.mxu0 0.0
    %821 = vmatprep.subr.mxu0 0.0
    %822 = vmatpush1.xpose.msra.mxu0 0.0
    %823 = vmatprep.subr.mxu0 0.0
    %824 = vmatpush1.xpose.msra.mxu0 0.0
    %825 = vmatprep.subr.mxu0 0.0
    %826 = vmatpush1.xpose.msra.mxu0 0.0
    %827 = vmatprep.subr.mxu0 0.0
    %828 = vmatpush1.xpose.msra.mxu0 0.0
    %829 = vmatprep.subr.mxu0 0.0
    %830 = vmatpush1.xpose.msra.mxu0 0.0
    %831 = vmatprep.subr.mxu0 0.0
    %832 = vmatpush1.xpose.msra.mxu0 0.0
    %833 = vmatprep.mubr.f32.mxu0 0.0
    %834 = vmatmul.mubr.f32.gmra.mrb[0].mxu0 %v761
    %v835 = vpop.f32.mrb[0].mxu0
    %v836 = vadd.f32 %v187, %v835
    %v837 = vpop.f32.mrb[0].mxu0
    %838 = vmatprep.mubr.f32.mxu0 0.0
    %839 = vmatmul.mubr.f32.gmra.mrb[0].mxu0 %v763
    %v840 = vpop.f32.mrb[0].mxu0
    %v841 = vadd.f32 %v188, %v840
    %v842 = vpop.f32.mrb[0].mxu0
    %843 = vdwg.mxu0
    %v844 = vsel %vm279, %v836, -inf
    %845 = vmax.xlane.f32.xlu0 %v844
    %v846 = vpop.xlane.xlu0 %845
    %v847 = vsel %vm279, %v841, -inf
    %848 = vmax.xlane.f32.xlu0 %v847
    %v849 = vpop.xlane.xlu0 %848
    %v850 = vsub.f32 %v836, %v846
    %v851 = vsub.f32 %v841, %v849
    %v852 = vmul.f32 %v850, 1.442695
    %v853 = vpow.pop %v852
    %v854 = vmul.f32 %v851, 1.442695
    %v855 = vpow.pop %v854
    %v856 = vsel %vm279, %v853, 0.0
    %857 = vadd.xlane.f32.xlu0 %v856
    %v858 = vpop.xlane.xlu0 %857
    %v859 = vsel %vm279, %v855, 0.0
    %860 = vadd.xlane.f32.xlu0 %v859
    %v861 = vpop.xlane.xlu0 %860
    %862 = vrot.lane.b32.xlu0 %v179, 48
    %v863 = vpop.permute.xlu0 %862
    %864 = vrot.lane.b32.xlu0 %v184, 48
    %v865 = vpop.permute.xlu0 %864
    %v869 = vsel %vm279, %v853, 0
    %v872 = vsel %vm279, %v855, 0
    %874 = vmatprep.subr.mxu0 0.0
    %875 = vmatpush1.msra.mxu0 %v863
    %876 = vmatprep.subr.mxu0 0.0
    %877 = vmatpush1.msra.mxu0 %v865
    %878 = vmatprep.subr.mxu0 0.0
    %879 = vmatpush1.msra.mxu0 0.0
    %880 = vmatprep.subr.mxu0 0.0
    %881 = vmatpush1.msra.mxu0 0.0
    %882 = vmatprep.subr.mxu0 0.0
    %883 = vmatpush1.msra.mxu0 0.0
    %884 = vmatprep.subr.mxu0 0.0
    %885 = vmatpush1.msra.mxu0 0.0
    %886 = vmatprep.subr.mxu0 0.0
    %887 = vmatpush1.msra.mxu0 0.0
    %888 = vmatprep.subr.mxu0 0.0
    %889 = vmatpush1.msra.mxu0 0.0
    %890 = vmatprep.subr.mxu0 0.0
    %891 = vmatpush1.msra.mxu0 0.0
    %892 = vmatprep.subr.mxu0 0.0
    %893 = vmatpush1.msra.mxu0 0.0
    %894 = vmatprep.subr.mxu0 0.0
    %895 = vmatpush1.msra.mxu0 0.0
    %896 = vmatprep.subr.mxu0 0.0
    %897 = vmatpush1.msra.mxu0 0.0
    %898 = vmatprep.subr.mxu0 0.0
    %899 = vmatpush1.msra.mxu0 0.0
    %900 = vmatprep.subr.mxu0 0.0
    %901 = vmatpush1.msra.mxu0 0.0
    %902 = vmatprep.subr.mxu0 0.0
    %903 = vmatpush1.msra.mxu0 0.0
    %904 = vmatprep.subr.mxu0 0.0
    %905 = vmatpush1.msra.mxu0 0.0
    %906 = vmatprep.subr.mxu0 0.0
    %907 = vmatpush1.msra.mxu0 0.0
    %908 = vmatprep.subr.mxu0 0.0
    %909 = vmatpush1.msra.mxu0 0.0
    %910 = vmatprep.subr.mxu0 0.0
    %911 = vmatpush1.msra.mxu0 0.0
    %912 = vmatprep.subr.mxu0 0.0
    %913 = vmatpush1.msra.mxu0 0.0
    %914 = vmatprep.subr.mxu0 0.0
    %915 = vmatpush1.msra.mxu0 0.0
    %916 = vmatprep.subr.mxu0 0.0
    %917 = vmatpush1.msra.mxu0 0.0
    %918 = vmatprep.subr.mxu0 0.0
    %919 = vmatpush1.msra.mxu0 0.0
    %920 = vmatprep.subr.mxu0 0.0
    %921 = vmatpush1.msra.mxu0 0.0
    %922 = vmatprep.subr.mxu0 0.0
    %923 = vmatpush1.msra.mxu0 0.0
    %924 = vmatprep.subr.mxu0 0.0
    %925 = vmatpush1.msra.mxu0 0.0
    %926 = vmatprep.subr.mxu0 0.0
    %927 = vmatpush1.msra.mxu0 0.0
    %928 = vmatprep.subr.mxu0 0.0
    %929 = vmatpush1.msra.mxu0 0.0
    %930 = vmatprep.subr.mxu0 0.0
    %931 = vmatpush1.msra.mxu0 0.0
    %932 = vmatprep.subr.mxu0 0.0
    %933 = vmatpush1.msra.mxu0 0.0
    %934 = vmatprep.subr.mxu0 0.0
    %935 = vmatpush1.msra.mxu0 0.0
    %936 = vmatprep.subr.mxu0 0.0
    %937 = vmatpush1.msra.mxu0 0.0
    %938 = vmatprep.mubr.f32.mxu0 0.0
    %939 = vmatmul.mubr.f32.gmra.mrb[0].mxu0 %v869
    %v940 = vpop.f32.mrb[0].mxu0
    %v941 = vadd.f32 0.0, %v940
    %v942 = vpop.f32.mrb[0].mxu0
    %943 = vmatprep.mubr.f32.mxu0 0.0
    %944 = vmatmul.mubr.f32.gmra.mrb[0].mxu0 %v872
    %v945 = vpop.f32.mrb[0].mxu0
    %v946 = vadd.f32 0.0, %v945
    %v947 = vpop.f32.mrb[0].mxu0
    %948 = vdwg.mxu0
    %v949 = vrcp.pop %v858
    %v950 = vrcp.pop %v861
    %v951 = vmul.f32 %v941, %v949
    %v952 = vmul.f32 %v946, %v950
    %v953 = vld [vmem:[#allocation7 + $0x10] sm:$0xff]
    %v955 = vsel %vm195, %v951, 0
    %v958 = vsel %vm195, %v952, 0
    %960 = vmatprep.subr.mxu0 0.0
    %961 = vmatpush1.msra.mxu0 %v953
    %962 = vmatprep.subr.mxu0 0.0
    %963 = vmatpush1.msra.mxu0 0.0
    %964 = vmatprep.subr.mxu0 0.0
    %965 = vmatpush1.msra.mxu0 0.0
    %966 = vmatprep.subr.mxu0 0.0
    %967 = vmatpush1.msra.mxu0 0.0
    %968 = vmatprep.subr.mxu0 0.0
    %969 = vmatpush1.msra.mxu0 0.0
    %970 = vmatprep.subr.mxu0 0.0
    %971 = vmatpush1.msra.mxu0 0.0
    %972 = vmatprep.subr.mxu0 0.0
    %973 = vmatpush1.msra.mxu0 0.0
    %974 = vmatprep.subr.mxu0 0.0
    %975 = vmatpush1.msra.mxu0 0.0
    %976 = vmatprep.subr.mxu0 0.0
    %977 = vmatpush1.msra.mxu0 0.0
    %978 = vmatprep.subr.mxu0 0.0
    %979 = vmatpush1.msra.mxu0 0.0
    %980 = vmatprep.subr.mxu0 0.0
    %981 = vmatpush1.msra.mxu0 0.0
    %982 = vmatprep.subr.mxu0 0.0
    %983 = vmatpush1.msra.mxu0 0.0
    %984 = vmatprep.subr.mxu0 0.0
    %985 = vmatpush1.msra.mxu0 0.0
    %986 = vmatprep.subr.mxu0 0.0
    %987 = vmatpush1.msra.mxu0 0.0
    %988 = vmatprep.subr.mxu0 0.0
    %989 = vmatpush1.msra.mxu0 0.0
    %990 = vmatprep.subr.mxu0 0.0
    %991 = vmatpush1.msra.mxu0 0.0
    %992 = vmatprep.subr.mxu0 0.0
    %993 = vmatpush1.msra.mxu0 0.0
    %994 = vmatprep.subr.mxu0 0.0
    %995 = vmatpush1.msra.mxu0 0.0
    %996 = vmatprep.subr.mxu0 0.0
    %997 = vmatpush1.msra.mxu0 0.0
    %998 = vmatprep.subr.mxu0 0.0
    %999 = vmatpush1.msra.mxu0 0.0
    %1000 = vmatprep.subr.mxu0 0.0
    %1001 = vmatpush1.msra.mxu0 0.0
    %1002 = vmatprep.subr.mxu0 0.0
    %1003 = vmatpush1.msra.mxu0 0.0
    %1004 = vmatprep.subr.mxu0 0.0
    %1005 = vmatpush1.msra.mxu0 0.0
    %1006 = vmatprep.subr.mxu0 0.0
    %1007 = vmatpush1.msra.mxu0 0.0
    %1008 = vmatprep.subr.mxu0 0.0
    %1009 = vmatpush1.msra.mxu0 0.0
    %1010 = vmatprep.subr.mxu0 0.0
    %1011 = vmatpush1.msra.mxu0 0.0
    %1012 = vmatprep.subr.mxu0 0.0
    %1013 = vmatpush1.msra.mxu0 0.0
    %1014 = vmatprep.subr.mxu0 0.0
    %1015 = vmatpush1.msra.mxu0 0.0
    %1016 = vmatprep.subr.mxu0 0.0
    %1017 = vmatpush1.msra.mxu0 0.0
    %1018 = vmatprep.subr.mxu0 0.0
    %1019 = vmatpush1.msra.mxu0 0.0
    %1020 = vmatprep.subr.mxu0 0.0
    %1021 = vmatpush1.msra.mxu0 0.0
    %1022 = vmatprep.subr.mxu0 0.0
    %1023 = vmatpush1.msra.mxu0 0.0
    %1024 = vmatprep.mubr.f32.mxu0 0.0
    %1025 = vmatmul.mubr.f32.gmra.mrb[0].mxu0 %v955
    %v1026 = vpop.f32.mrb[0].mxu0
    %v1027 = vadd.f32 0.0, %v1026
    %v1028 = vpop.f32.mrb[0].mxu0
    %1029 = vmatprep.mubr.f32.mxu0 0.0
    %1030 = vmatmul.mubr.f32.gmra.mrb[0].mxu0 %v958
    %v1031 = vpop.f32.mrb[0].mxu0
    %v1032 = vadd.f32 0.0, %v1031
    %v1033 = vpop.f32.mrb[0].mxu0
    %1034 = vdwg.mxu0
    %v1035 = vadd.f32 %v745, %v1027
    %v1036 = vadd.f32 %v750, %v1032
    %1037 = vrot.lane.b32.xlu0 %v179, 104
    %v1038 = vpop.permute.xlu0 %1037
    %1039 = vrot.lane.b32.xlu0 %v184, 104
    %v1040 = vpop.permute.xlu0 %1039
    %1041 = vrot.lane.b32.xlu0 %v179, 72
    %v1042 = vpop.permute.xlu0 %1041
    %1043 = vrot.lane.b32.xlu0 %v184, 72
    %v1044 = vpop.permute.xlu0 %1043
    %v1045 = vsel %vm195, %v1038, 0
    %v1047 = vsel %vm195, %v1040, 0
    %v1049 = vsel %vm195, %v1042, 0
    %v1051 = vsel %vm195, %v1044, 0
    %1053 = vmatprep.subr.mxu0 0.0
    %1054 = vmatpush1.xpose.msra.mxu0 %v1049
    %1055 = vmatprep.subr.mxu0 0.0
    %1056 = vmatpush1.xpose.msra.mxu0 %v1051
    %1057 = vmatprep.subr.mxu0 0.0
    %1058 = vmatpush1.xpose.msra.mxu0 0.0
    %1059 = vmatprep.subr.mxu0 0.0
    %1060 = vmatpush1.xpose.msra.mxu0 0.0
    %1061 = vmatprep.subr.mxu0 0.0
    %1062 = vmatpush1.xpose.msra.mxu0 0.0
    %1063 = vmatprep.subr.mxu0 0.0
    %1064 = vmatpush1.xpose.msra.mxu0 0.0
    %1065 = vmatprep.subr.mxu0 0.0
    %1066 = vmatpush1.xpose.msra.mxu0 0.0
    %1067 = vmatprep.subr.mxu0 0.0
    %1068 = vmatpush1.xpose.msra.mxu0 0.0
    %1069 = vmatprep.subr.mxu0 0.0
    %1070 = vmatpush1.xpose.msra.mxu0 0.0
    %1071 = vmatprep.subr.mxu0 0.0
    %1072 = vmatpush1.xpose.msra.mxu0 0.0
    %1073 = vmatprep.subr.mxu0 0.0
    %1074 = vmatpush1.xpose.msra.mxu0 0.0
    %1075 = vmatprep.subr.mxu0 0.0
    %1076 = vmatpush1.xpose.msra.mxu0 0.0
    %1077 = vmatprep.subr.mxu0 0.0
    %1078 = vmatpush1.xpose.msra.mxu0 0.0
    %1079 = vmatprep.subr.mxu0 0.0
    %1080 = vmatpush1.xpose.msra.mxu0 0.0
    %1081 = vmatprep.subr.mxu0 0.0
    %1082 = vmatpush1.xpose.msra.mxu0 0.0
    %1083 = vmatprep.subr.mxu0 0.0
    %1084 = vmatpush1.xpose.msra.mxu0 0.0
    %1085 = vmatprep.subr.mxu0 0.0
    %1086 = vmatpush1.xpose.msra.mxu0 0.0
    %1087 = vmatprep.subr.mxu0 0.0
    %1088 = vmatpush1.xpose.msra.mxu0 0.0
    %1089 = vmatprep.subr.mxu0 0.0
    %1090 = vmatpush1.xpose.msra.mxu0 0.0
    %1091 = vmatprep.subr.mxu0 0.0
    %1092 = vmatpush1.xpose.msra.mxu0 0.0
    %1093 = vmatprep.subr.mxu0 0.0
    %1094 = vmatpush1.xpose.msra.mxu0 0.0
    %1095 = vmatprep.subr.mxu0 0.0
    %1096 = vmatpush1.xpose.msra.mxu0 0.0
    %1097 = vmatprep.subr.mxu0 0.0
    %1098 = vmatpush1.xpose.msra.mxu0 0.0
    %1099 = vmatprep.subr.mxu0 0.0
    %1100 = vmatpush1.xpose.msra.mxu0 0.0
    %1101 = vmatprep.subr.mxu0 0.0
    %1102 = vmatpush1.xpose.msra.mxu0 0.0
    %1103 = vmatprep.subr.mxu0 0.0
    %1104 = vmatpush1.xpose.msra.mxu0 0.0
    %1105 = vmatprep.subr.mxu0 0.0
    %1106 = vmatpush1.xpose.msra.mxu0 0.0
    %1107 = vmatprep.subr.mxu0 0.0
    %1108 = vmatpush1.xpose.msra.mxu0 0.0
    %1109 = vmatprep.subr.mxu0 0.0
    %1110 = vmatpush1.xpose.msra.mxu0 0.0
    %1111 = vmatprep.subr.mxu0 0.0
    %1112 = vmatpush1.xpose.msra.mxu0 0.0
    %1113 = vmatprep.subr.mxu0 0.0
    %1114 = vmatpush1.xpose.msra.mxu0 0.0
    %1115 = vmatprep.subr.mxu0 0.0
    %1116 = vmatpush1.xpose.msra.mxu0 0.0
    %1117 = vmatprep.mubr.f32.mxu0 0.0
    %1118 = vmatmul.mubr.f32.gmra.mrb[0].mxu0 %v1045
    %v1119 = vpop.f32.mrb[0].mxu0
    %v1120 = vadd.f32 %v187, %v1119
    %v1121 = vpop.f32.mrb[0].mxu0
    %1122 = vmatprep.mubr.f32.mxu0 0.0
    %1123 = vmatmul.mubr.f32.gmra.mrb[0].mxu0 %v1047
    %v1124 = vpop.f32.mrb[0].mxu0
    %v1125 = vadd.f32 %v188, %v1124
    %v1126 = vpop.f32.mrb[0].mxu0
    %1127 = vdwg.mxu0
    %v1128 = vsel %vm279, %v1120, -inf
    %1129 = vmax.xlane.f32.xlu0 %v1128
    %v1130 = vpop.xlane.xlu0 %1129
    %v1131 = vsel %vm279, %v1125, -inf
    %1132 = vmax.xlane.f32.xlu0 %v1131
    %v1133 = vpop.xlane.xlu0 %1132
    %v1134 = vsub.f32 %v1120, %v1130
    %v1135 = vsub.f32 %v1125, %v1133
    %v1136 = vmul.f32 %v1134, 1.442695
    %v1137 = vpow.pop %v1136
    %v1138 = vmul.f32 %v1135, 1.442695
    %v1139 = vpow.pop %v1138
    %v1140 = vsel %vm279, %v1137, 0.0
    %1141 = vadd.xlane.f32.xlu0 %v1140
    %v1142 = vpop.xlane.xlu0 %1141
    %v1143 = vsel %vm279, %v1139, 0.0
    %1144 = vadd.xlane.f32.xlu0 %v1143
    %v1145 = vpop.xlane.xlu0 %1144
    %1146 = vrot.lane.b32.xlu0 %v179, 40
    %v1147 = vpop.permute.xlu0 %1146
    %1148 = vrot.lane.b32.xlu0 %v184, 40
    %v1149 = vpop.permute.xlu0 %1148
    %v1153 = vsel %vm279, %v1137, 0
    %v1156 = vsel %vm279, %v1139, 0
    %1158 = vmatprep.subr.mxu0 0.0
    %1159 = vmatpush1.msra.mxu0 %v1147
    %1160 = vmatprep.subr.mxu0 0.0
    %1161 = vmatpush1.msra.mxu0 %v1149
    %1162 = vmatprep.subr.mxu0 0.0
    %1163 = vmatpush1.msra.mxu0 0.0
    %1164 = vmatprep.subr.mxu0 0.0
    %1165 = vmatpush1.msra.mxu0 0.0
    %1166 = vmatprep.subr.mxu0 0.0
    %1167 = vmatpush1.msra.mxu0 0.0
    %1168 = vmatprep.subr.mxu0 0.0
    %1169 = vmatpush1.msra.mxu0 0.0
    %1170 = vmatprep.subr.mxu0 0.0
    %1171 = vmatpush1.msra.mxu0 0.0
    %1172 = vmatprep.subr.mxu0 0.0
    %1173 = vmatpush1.msra.mxu0 0.0
    %1174 = vmatprep.subr.mxu0 0.0
    %1175 = vmatpush1.msra.mxu0 0.0
    %1176 = vmatprep.subr.mxu0 0.0
    %1177 = vmatpush1.msra.mxu0 0.0
    %1178 = vmatprep.subr.mxu0 0.0
    %1179 = vmatpush1.msra.mxu0 0.0
    %1180 = vmatprep.subr.mxu0 0.0
    %1181 = vmatpush1.msra.mxu0 0.0
    %1182 = vmatprep.subr.mxu0 0.0
    %1183 = vmatpush1.msra.mxu0 0.0
    %1184 = vmatprep.subr.mxu0 0.0
    %1185 = vmatpush1.msra.mxu0 0.0
    %1186 = vmatprep.subr.mxu0 0.0
    %1187 = vmatpush1.msra.mxu0 0.0
    %1188 = vmatprep.subr.mxu0 0.0
    %1189 = vmatpush1.msra.mxu0 0.0
    %1190 = vmatprep.subr.mxu0 0.0
    %1191 = vmatpush1.msra.mxu0 0.0
    %1192 = vmatprep.subr.mxu0 0.0
    %1193 = vmatpush1.msra.mxu0 0.0
    %1194 = vmatprep.subr.mxu0 0.0
    %1195 = vmatpush1.msra.mxu0 0.0
    %1196 = vmatprep.subr.mxu0 0.0
    %1197 = vmatpush1.msra.mxu0 0.0
    %1198 = vmatprep.subr.mxu0 0.0
    %1199 = vmatpush1.msra.mxu0 0.0
    %1200 = vmatprep.subr.mxu0 0.0
    %1201 = vmatpush1.msra.mxu0 0.0
    %1202 = vmatprep.subr.mxu0 0.0
    %1203 = vmatpush1.msra.mxu0 0.0
    %1204 = vmatprep.subr.mxu0 0.0
    %1205 = vmatpush1.msra.mxu0 0.0
    %1206 = vmatprep.subr.mxu0 0.0
    %1207 = vmatpush1.msra.mxu0 0.0
    %1208 = vmatprep.subr.mxu0 0.0
    %1209 = vmatpush1.msra.mxu0 0.0
    %1210 = vmatprep.subr.mxu0 0.0
    %1211 = vmatpush1.msra.mxu0 0.0
    %1212 = vmatprep.subr.mxu0 0.0
    %1213 = vmatpush1.msra.mxu0 0.0
    %1214 = vmatprep.subr.mxu0 0.0
    %1215 = vmatpush1.msra.mxu0 0.0
    %1216 = vmatprep.subr.mxu0 0.0
    %1217 = vmatpush1.msra.mxu0 0.0
    %1218 = vmatprep.subr.mxu0 0.0
    %1219 = vmatpush1.msra.mxu0 0.0
    %1220 = vmatprep.subr.mxu0 0.0
    %1221 = vmatpush1.msra.mxu0 0.0
    %1222 = vmatprep.mubr.f32.mxu0 0.0
    %1223 = vmatmul.mubr.f32.gmra.mrb[0].mxu0 %v1153
    %v1224 = vpop.f32.mrb[0].mxu0
    %v1225 = vadd.f32 0.0, %v1224
    %v1226 = vpop.f32.mrb[0].mxu0
    %1227 = vmatprep.mubr.f32.mxu0 0.0
    %1228 = vmatmul.mubr.f32.gmra.mrb[0].mxu0 %v1156
    %v1229 = vpop.f32.mrb[0].mxu0
    %v1230 = vadd.f32 0.0, %v1229
    %v1231 = vpop.f32.mrb[0].mxu0
    %1232 = vdwg.mxu0
    %v1233 = vrcp.pop %v1142
    %v1234 = vrcp.pop %v1145
    %v1235 = vmul.f32 %v1225, %v1233
    %v1236 = vmul.f32 %v1230, %v1234
    %v1237 = vld [vmem:[#allocation7 + $0x18] sm:$0xff]
    %v1239 = vsel %vm195, %v1235, 0
    %v1242 = vsel %vm195, %v1236, 0
    %1244 = vmatprep.subr.mxu0 0.0
    %1245 = vmatpush1.msra.mxu0 %v1237
    %1246 = vmatprep.subr.mxu0 0.0
    %1247 = vmatpush1.msra.mxu0 0.0
    %1248 = vmatprep.subr.mxu0 0.0
    %1249 = vmatpush1.msra.mxu0 0.0
    %1250 = vmatprep.subr.mxu0 0.0
    %1251 = vmatpush1.msra.mxu0 0.0
    %1252 = vmatprep.subr.mxu0 0.0
    %1253 = vmatpush1.msra.mxu0 0.0
    %1254 = vmatprep.subr.mxu0 0.0
    %1255 = vmatpush1.msra.mxu0 0.0
    %1256 = vmatprep.subr.mxu0 0.0
    %1257 = vmatpush1.msra.mxu0 0.0
    %1258 = vmatprep.subr.mxu0 0.0
    %1259 = vmatpush1.msra.mxu0 0.0
    %1260 = vmatprep.subr.mxu0 0.0
    %1261 = vmatpush1.msra.mxu0 0.0
    %1262 = vmatprep.subr.mxu0 0.0
    %1263 = vmatpush1.msra.mxu0 0.0
    %1264 = vmatprep.subr.mxu0 0.0
    %1265 = vmatpush1.msra.mxu0 0.0
    %1266 = vmatprep.subr.mxu0 0.0
    %1267 = vmatpush1.msra.mxu0 0.0
    %1268 = vmatprep.subr.mxu0 0.0
    %1269 = vmatpush1.msra.mxu0 0.0
    %1270 = vmatprep.subr.mxu0 0.0
    %1271 = vmatpush1.msra.mxu0 0.0
    %1272 = vmatprep.subr.mxu0 0.0
    %1273 = vmatpush1.msra.mxu0 0.0
    %1274 = vmatprep.subr.mxu0 0.0
    %1275 = vmatpush1.msra.mxu0 0.0
    %1276 = vmatprep.subr.mxu0 0.0
    %1277 = vmatpush1.msra.mxu0 0.0
    %1278 = vmatprep.subr.mxu0 0.0
    %1279 = vmatpush1.msra.mxu0 0.0
    %1280 = vmatprep.subr.mxu0 0.0
    %1281 = vmatpush1.msra.mxu0 0.0
    %1282 = vmatprep.subr.mxu0 0.0
    %1283 = vmatpush1.msra.mxu0 0.0
    %1284 = vmatprep.subr.mxu0 0.0
    %1285 = vmatpush1.msra.mxu0 0.0
    %1286 = vmatprep.subr.mxu0 0.0
    %1287 = vmatpush1.msra.mxu0 0.0
    %1288 = vmatprep.subr.mxu0 0.0
    %1289 = vmatpush1.msra.mxu0 0.0
    %1290 = vmatprep.subr.mxu0 0.0
    %1291 = vmatpush1.msra.mxu0 0.0
    %1292 = vmatprep.subr.mxu0 0.0
    %1293 = vmatpush1.msra.mxu0 0.0
    %1294 = vmatprep.subr.mxu0 0.0
    %1295 = vmatpush1.msra.mxu0 0.0
    %1296 = vmatprep.subr.mxu0 0.0
    %1297 = vmatpush1.msra.mxu0 0.0
    %1298 = vmatprep.subr.mxu0 0.0
    %1299 = vmatpush1.msra.mxu0 0.0
    %1300 = vmatprep.subr.mxu0 0.0
    %1301 = vmatpush1.msra.mxu0 0.0
    %1302 = vmatprep.subr.mxu0 0.0
    %1303 = vmatpush1.msra.mxu0 0.0
    %1304 = vmatprep.subr.mxu0 0.0
    %1305 = vmatpush1.msra.mxu0 0.0
    %1306 = vmatprep.subr.mxu0 0.0
    %1307 = vmatpush1.msra.mxu0 0.0
    %1308 = vmatprep.mubr.f32.mxu0 0.0
    %1309 = vmatmul.mubr.f32.gmra.mrb[0].mxu0 %v1239
    %v1310 = vpop.f32.mrb[0].mxu0
    %v1311 = vadd.f32 0.0, %v1310
    %v1312 = vpop.f32.mrb[0].mxu0
    %1313 = vmatprep.mubr.f32.mxu0 0.0
    %1314 = vmatmul.mubr.f32.gmra.mrb[0].mxu0 %v1242
    %v1315 = vpop.f32.mrb[0].mxu0
    %v1316 = vadd.f32 0.0, %v1315
    %v1317 = vpop.f32.mrb[0].mxu0
    %1318 = vdwg.mxu0
    %v1319 = vadd.f32 %v1035, %v1311
    %v1320 = vadd.f32 %v1036, %v1316
    %v1321 = vld [vmem:[%s4] sm:$0x1]
    %v1323 = vlaneseq
    %v1324 = vshrl.u32 %v1323, 7
    %v1325 = vsub.s32 0, %v1324
    %v1326 = vrot.slane %v1321, %v1325
    %v1328 = vadd.f32 %v1319, %v1326
    %v1329 = vadd.f32 %v1320, %v1326
    %1330 = vst.msk [vmem:[#allocation8] sm:$0xff] %vm67, %v1328
    %1331 = vst.msk [vmem:[#allocation8 + $0x8] sm:$0xff] %vm67, %v1329
    // Predicated region
    $region38: #{msa_block.1} parent=1 // pred_check
      _
    $region39: #{msa_block.1} parent=1 // pred_check_branch
      %1333 = sbr.rel (0) target = $region41
    $region40: #{msa_block.1} parent=1 // pred_region
      %s1335 = ssub.s32 256, 256
      %1336 = vsyncadd [#allocation4], %s1335
      %s1337 = sshll.u32 [#allocation8], 4
      %s1338 = int_to_ptr.vmem [resolvable:$true] %s1337
      %1343 = dma.vmem_to_hbm [thread:$0]  %s1338, 256, %s6, [#allocation4], 128, 128, 8
    $region41: #{msa_block.1} parent=1 // pred_fallthru
      _
    // Predicated region
    $region42: #{msa_block.1} parent=1 // pred_check
      _
    $region43: #{msa_block.1} parent=1 // pred_check_branch
      %1345 = sbr.rel (0) target = $region45
    $region44: #{msa_block.1} parent=1 // pred_region
      %1346 = dma.done [#allocation4], 256
    $region45: #{msa_block.1} parent=1 // pred_fallthru
      _
    %1347 = vsyncpa [#allocation3], 1
    %1348 = vsyncpa [#allocation6], 1
    %1349 = vsyncpa [#allocation4], 1

</llo_original>
